<compile_context>
chip_gen: v7x
topology: tpu7x:2x2x1
jax: 0.10.0
libtpu: 0.0.40
codegen_flags: <defaults>
</compile_context>

<pallas_src>
import functools

import jax
import jax.numpy as jnp
from jax.experimental import pallas as pl
from jax.experimental.pallas import tpu as pltpu


D_OUT_PAD = 128   # lane-dense output width; real NB_OUTPUTS columns sliced outside


# ----------------------------------------------------------------------------
# Fused head kernel: (pronoun, A|B) span rows -> class scores (padded to 128)
# ----------------------------------------------------------------------------
def fused_head_kernel(
    p_ref,                                       # [TB*S, F]    pronoun rows
    ab_ref,                                      # [2*TB*S, F]  A rows then B rows
    wp_p_ref, bp_p_ref, wa_p_ref,                # pronoun pooling weights
    wp_o_ref, bp_o_ref, wa_o_ref,                # A/B (shared) pooling weights
    w1_ref, b1_ref, w2_ref, b2_ref, w3_ref, b3_ref,   # MLP (w3/b3 lane-padded)
    o_ref,                                       # [TB, 128] lane-dense output
    *, tb, span,
):
    P = wp_p_ref.shape[1]

    def pool(x_flat, wp, bp, wa_row, nb):
        # x_flat: [nb*span, F] -> pooled [nb, P] (f32)
        proj = jnp.dot(x_flat, wp, preferred_element_type=jnp.float32) + bp  # [nb*S, P]
        proj3 = proj.reshape(nb, span, P)                                    # [nb, S, P]
        # attention scores on the VPU, lane-dense [nb, S]
        scores = jnp.sum(proj3 * wa_row, axis=-1)                            # [nb, S]
        m = jnp.max(scores, axis=-1, keepdims=True)                          # [nb, 1]
        e = jnp.exp(scores - m)                                              # [nb, S]
        inv = pl.reciprocal(jnp.sum(e, axis=-1, keepdims=True), approx=True) # [nb, 1]
        w = e * inv                                                          # [nb, S]
        return jnp.sum(proj3 * w[:, :, None], axis=1)                        # [nb, P]

    # --- pooling (pronoun; A and B share proj_other via one stacked matmul) --
    p_emb = pool(p_ref[...], wp_p_ref[...], bp_p_ref[...], wa_p_ref[...], tb)
    ab_emb = pool(ab_ref[...], wp_o_ref[...], bp_o_ref[...], wa_o_ref[...], 2 * tb)
    a_emb = ab_emb[:tb]                                                      # [TB, P]
    b_emb = ab_emb[tb:]                                                      # [TB, P]

    emb = jnp.concatenate([p_emb, a_emb, b_emb], axis=1)                     # [TB, 3P]

    # --- MLP (Dropout = identity in eval) ------------------------------------
    h = jnp.dot(emb.astype(w1_ref.dtype), w1_ref[...],
                preferred_element_type=jnp.float32) + b1_ref[...]
    h = jnp.maximum(h, 0.0)
    h = jnp.dot(h.astype(w2_ref.dtype), w2_ref[...],
                preferred_element_type=jnp.float32) + b2_ref[...]
    h = jnp.maximum(h, 0.0)
    o = jnp.dot(h.astype(w3_ref.dtype), w3_ref[...],
                preferred_element_type=jnp.float32) + b3_ref[...]
    o_ref[...] = o.astype(o_ref.dtype)


# ----------------------------------------------------------------------------
# Wrapper: choose tile, pad batch / output lanes, build the fused pallas_call.
# ----------------------------------------------------------------------------
def _round_up(x, m):
    return ((x + m - 1) // m) * m


@functools.partial(jax.jit, static_argnames=("tb", "nb_outputs", "compute_dtype"))
def model_head_forward(pronoun, A, B, params, *, tb=32, nb_outputs=3,
                       compute_dtype=jnp.bfloat16):
    Bsz, S, F = pronoun.shape
    P = params["wp_p"].shape[1]
    D_hid = params["w1"].shape[1]
    cdt = compute_dtype

    # --- batch tile selection -------------------------------------------------
    b8 = _round_up(Bsz, 8)
    tb_eff = min(_round_up(tb, 8), b8)
    # keep >= 2 grid steps (v7x megacore sharding) when the batch allows it
    if b8 // tb_eff < 2 and b8 >= 16:
        tb_eff = max(8, _round_up(b8 // 2, 8))
    B_pad = _round_up(Bsz, tb_eff)
    nblk = B_pad // tb_eff

    # --- inputs: cast to compute dtype, pad batch, pre-flatten ----------------
    def padb(x):
        x = x.astype(cdt)
        if B_pad != Bsz:
            x = jnp.pad(x, ((0, B_pad - Bsz), (0, 0), (0, 0)))
        return x

    p_pad, a_pad, b_pad = padb(pronoun), padb(A), padb(B)

    # pronoun rows, flattened in HBM (free row-major reshape)
    p_rows = p_pad.reshape(B_pad * S, F)
    # A/B rows grouped per batch-block: [A-rows of block | B-rows of block]
    ab_rows = jnp.stack(
        [a_pad.reshape(nblk, tb_eff, S, F), b_pad.reshape(nblk, tb_eff, S, F)],
        axis=1,
    ).reshape(B_pad * 2 * S, F)

    # --- weights: large ones in compute dtype, small/accurate ones in f32 -----
    wp_p = params["wp_p"].astype(cdt)
    wp_o = params["wp_o"].astype(cdt)
    w1 = params["w1"].astype(cdt)
    w2 = params["w2"].astype(cdt)
    # final layer zero-padded to 128 lanes for a lane-dense output store
    w3p = jnp.zeros((D_hid, D_OUT_PAD), jnp.float32).at[:, :nb_outputs].set(params["w3"])
    b3p = jnp.zeros((1, D_OUT_PAD), jnp.float32).at[:, :nb_outputs].set(params["b3"])

    def const(shape):
        return pl.BlockSpec(shape, lambda i: (0, 0))

    p_spec = pl.BlockSpec((tb_eff * S, F), lambda i: (i, 0))
    ab_spec = pl.BlockSpec((2 * tb_eff * S, F), lambda i: (i, 0))

    out = pl.pallas_call(
        functools.partial(fused_head_kernel, tb=tb_eff, span=S),
        out_shape=jax.ShapeDtypeStruct((B_pad, D_OUT_PAD), jnp.float32),
        grid_spec=pltpu.PrefetchScalarGridSpec(
            num_scalar_prefetch=0,
            grid=(nblk,),
            in_specs=[
                p_spec, ab_spec,
                const((F, P)), const((1, P)), const((1, P)),          # pronoun pooling
                const((F, P)), const((1, P)), const((1, P)),          # A/B shared pooling
                const((3 * P, D_hid)), const((1, D_hid)),             # MLP layer 1
                const((D_hid, D_hid)), const((1, D_hid)),             # MLP layer 2
                const((D_hid, D_OUT_PAD)), const((1, D_OUT_PAD)),     # MLP layer 3 (padded)
            ],
            out_specs=pl.BlockSpec((tb_eff, D_OUT_PAD), lambda i: (i, 0)),
        ),
        compiler_params=pltpu.CompilerParams(
            dimension_semantics=("parallel",),
        ),
    )(
        p_rows, ab_rows,
        wp_p, params["bp_p"], params["wa_p"],
        wp_o, params["bp_o"], params["wa_o"],
        w1, params["b1"], w2, params["b2"],
        w3p, b3p,
    )
    return out[:Bsz, :nb_outputs]


# ----------------------------------------------------------------------------
# Parameter init (PyTorch-style uniform(-1/sqrt(fan_in), 1/sqrt(fan_in)))
# ----------------------------------------------------------------------------
def linear_params(key, fan_in, fan_out, bias=True):
    k1, k2 = jax.random.split(key)
    bound = 1.0 / jnp.sqrt(fan_in)
    w = jax.random.uniform(k1, (fan_in, fan_out), jnp.float32, -bound, bound)
    if bias:
        b = jax.random.uniform(k2, (1, fan_out), jnp.float32, -bound, bound)
        return w, b
    return w, None


def att_params(key, d_proj):
    # nn.Linear(d_proj, 1, bias=False).weight is [1, d_proj]; kept as a [1, P]
    # row so the kernel scores attention with a VPU broadcast-multiply.
    bound = 1.0 / jnp.sqrt(d_proj)
    return jax.random.uniform(key, (1, d_proj), jnp.float32, -bound, bound)


# ----------------------------------------------------------------------------
# Pure-JAX reference (f32) for a sanity check.
# ----------------------------------------------------------------------------
def reference_forward(pronoun, A, B, params):
    def pool(x, wp, bp, wa):
        proj = x @ wp + bp                      # [B, S, P]
        scores = jnp.sum(proj * wa, axis=-1)    # [B, S]
        w = jax.nn.softmax(scores, axis=-1)     # [B, S]
        return jnp.einsum("bsp,bs->bp", proj, w)

    p = pool(pronoun, params["wp_p"], params["bp_p"], params["wa_p"])
    a = pool(A, params["wp_o"], params["bp_o"], params["wa_o"])
    b = pool(B, params["wp_o"], params["bp_o"], params["wa_o"])
    emb = jnp.concatenate([p, a, b], axis=1)
    h = jnp.maximum(emb @ params["w1"] + params["b1"], 0.0)
    h = jnp.maximum(h @ params["w2"] + params["b2"], 0.0)
    return h @ params["w3"] + params["b3"]


if __name__ == "__main__":
    key = jax.random.PRNGKey(0)

    # Small shapes consistent with the module structure:
    BATCH = 2          # number of examples
    SPAN = 8           # wordpieces per span
    IN_FEATURES = 128  # BERT hidden size (small stand-in for 768/1024)
    D_PROJ = 128       # cfg.D_PROJ
    D_HID = 256        # cfg.D_HID
    NB_OUTPUTS = 3     # cfg.NB_OUTPUTS (A / B / Neither)

    keys = jax.random.split(key, 16)
    pronoun = jax.random.normal(keys[0], (BATCH, SPAN, IN_FEATURES), jnp.float32)
    A = jax.random.normal(keys[1], (BATCH, SPAN, IN_FEATURES), jnp.float32)
    B = jax.random.normal(keys[2], (BATCH, SPAN, IN_FEATURES), jnp.float32)

    wp_p, bp_p = linear_params(keys[3], IN_FEATURES, D_PROJ)
    wp_o, bp_o = linear_params(keys[4], IN_FEATURES, D_PROJ)
    wa_p = att_params(keys[5], D_PROJ)
    wa_o = att_params(keys[6], D_PROJ)
    w1, b1 = linear_params(keys[7], 3 * D_PROJ, D_HID)
    w2, b2 = linear_params(keys[8], D_HID, D_HID)
    w3, b3 = linear_params(keys[9], D_HID, NB_OUTPUTS)

    params = dict(wp_p=wp_p, bp_p=bp_p, wa_p=wa_p,
                  wp_o=wp_o, bp_o=bp_o, wa_o=wa_o,
                  w1=w1, b1=b1, w2=w2, b2=b2, w3=w3, b3=b3)

    ref = reference_forward(pronoun, A, B, params)

    # 1) f32 compute path: tight check of the kernel math (approx reciprocal
    #    in the softmax denominator -> slightly loose tolerance).
    scores_f32 = model_head_forward(pronoun, A, B, params, tb=32,
                                    nb_outputs=NB_OUTPUTS,
                                    compute_dtype=jnp.float32)
    jax.block_until_ready(scores_f32)
    assert scores_f32.shape == (BATCH, NB_OUTPUTS)
    assert jnp.allclose(scores_f32, ref, atol=2e-3, rtol=2e-3), "f32 mismatch vs reference"

    # 2) bf16 compute path (production default): looser tolerance vs the f32
    #    reference due to bf16 storage of spans and large weights.
    scores_bf16 = model_head_forward(pronoun, A, B, params, tb=32,
                                     nb_outputs=NB_OUTPUTS,
                                     compute_dtype=jnp.bfloat16)
    jax.block_until_ready(scores_bf16)
    assert scores_bf16.shape == (BATCH, NB_OUTPUTS)
    assert jnp.allclose(scores_bf16, ref, atol=5e-2, rtol=5e-2), "bf16 mismatch vs reference"

    # TODO(synk): BERT encoder, spacy/BERT tokenization and preprocess_data /
    # get_vect_from_pos are external data-prep components and are not part of
    # the kernel; inputs here are the per-span contextual vectors they produce.
    print("KERNEL_OK")
</pallas_src>

<mosaic_0001>
module attributes {stable_mosaic.version = 11 : i64} {
  func.func @fused_head_kernel(%arg0: i32, %arg1: memref<64x128xf32, #tpu.memory_space<vmem>>, %arg2: memref<128x128xf32, #tpu.memory_space<vmem>>, %arg3: memref<128x128xf32, #tpu.memory_space<vmem>>, %arg4: memref<1x128xf32, #tpu.memory_space<vmem>>, %arg5: memref<1x128xf32, #tpu.memory_space<vmem>>, %arg6: memref<128x128xf32, #tpu.memory_space<vmem>>, %arg7: memref<1x128xf32, #tpu.memory_space<vmem>>, %arg8: memref<1x128xf32, #tpu.memory_space<vmem>>, %arg9: memref<384x256xf32, #tpu.memory_space<vmem>>, %arg10: memref<1x256xf32, #tpu.memory_space<vmem>>, %arg11: memref<256x256xf32, #tpu.memory_space<vmem>>, %arg12: memref<1x256xf32, #tpu.memory_space<vmem>>, %arg13: memref<256x128xf32, #tpu.memory_space<vmem>>, %arg14: memref<1x128xf32, #tpu.memory_space<vmem>>, %arg15: memref<8x128xf32, #tpu.memory_space<vmem>>) attributes {dimension_semantics = [#tpu.dimension_semantics<parallel>], iteration_bounds = array<i64: 1>, scalar_prefetch = 0 : i64, scratch_operands = 0 : i64, tpu.core_type = #tpu.core_type<tc>, window_params = [{transform_indices = @transform_0, window_bounds = array<i64: 64, 128>}, {transform_indices = @transform_1, window_bounds = array<i64: 128, 128>}, {pipeline_mode = #tpu.pipeline_mode<synchronous>, transform_indices = @transform_2, window_bounds = array<i64: 128, 128>}, {pipeline_mode = #tpu.pipeline_mode<synchronous>, transform_indices = @transform_3, window_bounds = array<i64: 1, 128>}, {pipeline_mode = #tpu.pipeline_mode<synchronous>, transform_indices = @transform_4, window_bounds = array<i64: 1, 128>}, {pipeline_mode = #tpu.pipeline_mode<synchronous>, transform_indices = @transform_5, window_bounds = array<i64: 128, 128>}, {pipeline_mode = #tpu.pipeline_mode<synchronous>, transform_indices = @transform_6, window_bounds = array<i64: 1, 128>}, {pipeline_mode = #tpu.pipeline_mode<synchronous>, transform_indices = @transform_7, window_bounds = array<i64: 1, 128>}, {pipeline_mode = #tpu.pipeline_mode<synchronous>, transform_indices = @transform_8, window_bounds = array<i64: 384, 256>}, {pipeline_mode = #tpu.pipeline_mode<synchronous>, transform_indices = @transform_9, window_bounds = array<i64: 1, 256>}, {pipeline_mode = #tpu.pipeline_mode<synchronous>, transform_indices = @transform_10, window_bounds = array<i64: 256, 256>}, {pipeline_mode = #tpu.pipeline_mode<synchronous>, transform_indices = @transform_11, window_bounds = array<i64: 1, 256>}, {pipeline_mode = #tpu.pipeline_mode<synchronous>, transform_indices = @transform_12, window_bounds = array<i64: 256, 128>}, {pipeline_mode = #tpu.pipeline_mode<synchronous>, transform_indices = @transform_13, window_bounds = array<i64: 1, 128>}, {transform_indices = @transform_14, window_bounds = array<i64: 8, 128>}]} {
    %c0 = arith.constant 0 : index
    %c0_0 = arith.constant 0 : index
    %0 = vector.load %arg1[%c0, %c0_0] : memref<64x128xf32, #tpu.memory_space<vmem>>, vector<64x128xf32>
    %c0_1 = arith.constant 0 : index
    %c0_2 = arith.constant 0 : index
    %1 = vector.load %arg3[%c0_1, %c0_2] : memref<128x128xf32, #tpu.memory_space<vmem>>, vector<128x128xf32>
    %c0_3 = arith.constant 0 : index
    %c0_4 = arith.constant 0 : index
    %2 = vector.load %arg4[%c0_3, %c0_4] : memref<1x128xf32, #tpu.memory_space<vmem>>, vector<1x128xf32>
    %c0_5 = arith.constant 0 : index
    %c0_6 = arith.constant 0 : index
    %3 = vector.load %arg5[%c0_5, %c0_6] : memref<1x128xf32, #tpu.memory_space<vmem>>, vector<1x128xf32>
    %cst = arith.constant dense<0.000000e+00> : vector<64x128xf32>
    %4 = tpu.matmul %0, %1, %cst {dimension_numbers = #tpu.dot_dimension_numbers<[1], [0], [0], [1], [0, 0, 1, 1], [], []>} : vector<64x128xf32>, vector<128x128xf32>, vector<64x128xf32> -> vector<64x128xf32>
    %5 = vector.broadcast %2 : vector<1x128xf32> to vector<64x128xf32>
    %6 = arith.addf %4, %5 : vector<64x128xf32>
    %7 = vector.shape_cast %6 : vector<64x128xf32> to vector<8x8x128xf32>
    %8 = vector.shape_cast %3 : vector<1x128xf32> to vector<1x1x128xf32>
    %9 = vector.broadcast %8 : vector<1x1x128xf32> to vector<8x8x128xf32>
    %10 = arith.mulf %7, %9 : vector<8x8x128xf32>
    %cst_7 = arith.constant dense<0.000000e+00> : vector<8x8xf32>
    %11 = vector.multi_reduction <add>, %10, %cst_7 [2] : vector<8x8x128xf32> to vector<8x8xf32>
    %cst_8 = arith.constant dense<0xFF800000> : vector<8xf32>
    %12 = vector.multi_reduction <maximumf>, %11, %cst_8 [1] : vector<8x8xf32> to vector<8xf32>
    %13 = vector.shape_cast %12 : vector<8xf32> to vector<8x1xf32>
    %14 = vector.broadcast %13 : vector<8x1xf32> to vector<8x8xf32>
    %15 = arith.subf %11, %14 : vector<8x8xf32>
    %16 = math.exp %15 : vector<8x8xf32>
    %cst_9 = arith.constant dense<0.000000e+00> : vector<8xf32>
    %17 = vector.multi_reduction <add>, %16, %cst_9 [1] : vector<8x8xf32> to vector<8xf32>
    %18 = vector.shape_cast %17 : vector<8xf32> to vector<8x1xf32>
    %19 = tpu.reciprocal %18 {approx = true} : vector<8x1xf32> -> vector<8x1xf32>
    %20 = vector.broadcast %19 : vector<8x1xf32> to vector<8x8xf32>
    %21 = arith.mulf %16, %20 : vector<8x8xf32>
    %22 = vector.shape_cast %21 : vector<8x8xf32> to vector<8x8x1xf32>
    %23 = vector.broadcast %22 : vector<8x8x1xf32> to vector<8x8x128xf32>
    %24 = arith.mulf %7, %23 : vector<8x8x128xf32>
    %cst_10 = arith.constant dense<0.000000e+00> : vector<8x128xf32>
    %25 = vector.multi_reduction <add>, %24, %cst_10 [1] : vector<8x8x128xf32> to vector<8x128xf32>
    %c0_11 = arith.constant 0 : index
    %c0_12 = arith.constant 0 : index
    %26 = vector.load %arg2[%c0_11, %c0_12] : memref<128x128xf32, #tpu.memory_space<vmem>>, vector<128x128xf32>
    %c0_13 = arith.constant 0 : index
    %c0_14 = arith.constant 0 : index
    %27 = vector.load %arg6[%c0_13, %c0_14] : memref<128x128xf32, #tpu.memory_space<vmem>>, vector<128x128xf32>
    %c0_15 = arith.constant 0 : index
    %c0_16 = arith.constant 0 : index
    %28 = vector.load %arg7[%c0_15, %c0_16] : memref<1x128xf32, #tpu.memory_space<vmem>>, vector<1x128xf32>
    %c0_17 = arith.constant 0 : index
    %c0_18 = arith.constant 0 : index
    %29 = vector.load %arg8[%c0_17, %c0_18] : memref<1x128xf32, #tpu.memory_space<vmem>>, vector<1x128xf32>
    %cst_19 = arith.constant dense<0.000000e+00> : vector<128x128xf32>
    %30 = tpu.matmul %26, %27, %cst_19 {dimension_numbers = #tpu.dot_dimension_numbers<[1], [0], [0], [1], [0, 0, 1, 1], [], []>} : vector<128x128xf32>, vector<128x128xf32>, vector<128x128xf32> -> vector<128x128xf32>
    %31 = vector.broadcast %28 : vector<1x128xf32> to vector<128x128xf32>
    %32 = arith.addf %30, %31 : vector<128x128xf32>
    %33 = vector.shape_cast %32 : vector<128x128xf32> to vector<16x8x128xf32>
    %34 = vector.shape_cast %29 : vector<1x128xf32> to vector<1x1x128xf32>
    %35 = vector.broadcast %34 : vector<1x1x128xf32> to vector<16x8x128xf32>
    %36 = arith.mulf %33, %35 : vector<16x8x128xf32>
    %cst_20 = arith.constant dense<0.000000e+00> : vector<16x8xf32>
    %37 = vector.multi_reduction <add>, %36, %cst_20 [2] : vector<16x8x128xf32> to vector<16x8xf32>
    %cst_21 = arith.constant dense<0xFF800000> : vector<16xf32>
    %38 = vector.multi_reduction <maximumf>, %37, %cst_21 [1] : vector<16x8xf32> to vector<16xf32>
    %39 = vector.shape_cast %38 : vector<16xf32> to vector<16x1xf32>
    %40 = vector.broadcast %39 : vector<16x1xf32> to vector<16x8xf32>
    %41 = arith.subf %37, %40 : vector<16x8xf32>
    %42 = math.exp %41 : vector<16x8xf32>
    %cst_22 = arith.constant dense<0.000000e+00> : vector<16xf32>
    %43 = vector.multi_reduction <add>, %42, %cst_22 [1] : vector<16x8xf32> to vector<16xf32>
    %44 = vector.shape_cast %43 : vector<16xf32> to vector<16x1xf32>
    %45 = tpu.reciprocal %44 {approx = true} : vector<16x1xf32> -> vector<16x1xf32>
    %46 = vector.broadcast %45 : vector<16x1xf32> to vector<16x8xf32>
    %47 = arith.mulf %42, %46 : vector<16x8xf32>
    %48 = vector.shape_cast %47 : vector<16x8xf32> to vector<16x8x1xf32>
    %49 = vector.broadcast %48 : vector<16x8x1xf32> to vector<16x8x128xf32>
    %50 = arith.mulf %33, %49 : vector<16x8x128xf32>
    %cst_23 = arith.constant dense<0.000000e+00> : vector<16x128xf32>
    %51 = vector.multi_reduction <add>, %50, %cst_23 [1] : vector<16x8x128xf32> to vector<16x128xf32>
    %52 = vector.extract_strided_slice %51 {offsets = [0, 0], sizes = [8, 128], strides = [1, 1]} : vector<16x128xf32> to vector<8x128xf32>
    %53 = vector.extract_strided_slice %51 {offsets = [8, 0], sizes = [8, 128], strides = [1, 1]} : vector<16x128xf32> to vector<8x128xf32>
    %54 = tpu.concatenate %25, %52, %53 in 1 : vector<8x128xf32>, vector<8x128xf32>, vector<8x128xf32> -> vector<8x384xf32>
    %c0_24 = arith.constant 0 : index
    %c0_25 = arith.constant 0 : index
    %55 = vector.load %arg9[%c0_24, %c0_25] : memref<384x256xf32, #tpu.memory_space<vmem>>, vector<384x256xf32>
    %cst_26 = arith.constant dense<0.000000e+00> : vector<8x256xf32>
    %56 = tpu.matmul %54, %55, %cst_26 {dimension_numbers = #tpu.dot_dimension_numbers<[1], [0], [0], [1], [0, 0, 1, 1], [], []>} : vector<8x384xf32>, vector<384x256xf32>, vector<8x256xf32> -> vector<8x256xf32>
    %c0_27 = arith.constant 0 : index
    %c0_28 = arith.constant 0 : index
    %57 = vector.load %arg10[%c0_27, %c0_28] : memref<1x256xf32, #tpu.memory_space<vmem>>, vector<1x256xf32>
    %58 = vector.broadcast %57 : vector<1x256xf32> to vector<8x256xf32>
    %59 = arith.addf %56, %58 : vector<8x256xf32>
    %cst_29 = arith.constant 0.000000e+00 : f32
    %60 = vector.broadcast %cst_29 : f32 to vector<8x256xf32>
    %61 = arith.maximumf %59, %60 : vector<8x256xf32>
    %c0_30 = arith.constant 0 : index
    %c0_31 = arith.constant 0 : index
    %62 = vector.load %arg11[%c0_30, %c0_31] : memref<256x256xf32, #tpu.memory_space<vmem>>, vector<256x256xf32>
    %cst_32 = arith.constant dense<0.000000e+00> : vector<8x256xf32>
    %63 = tpu.matmul %61, %62, %cst_32 {dimension_numbers = #tpu.dot_dimension_numbers<[1], [0], [0], [1], [0, 0, 1, 1], [], []>} : vector<8x256xf32>, vector<256x256xf32>, vector<8x256xf32> -> vector<8x256xf32>
    %c0_33 = arith.constant 0 : index
    %c0_34 = arith.constant 0 : index
    %64 = vector.load %arg12[%c0_33, %c0_34] : memref<1x256xf32, #tpu.memory_space<vmem>>, vector<1x256xf32>
    %65 = vector.broadcast %64 : vector<1x256xf32> to vector<8x256xf32>
    %66 = arith.addf %63, %65 : vector<8x256xf32>
    %cst_35 = arith.constant 0.000000e+00 : f32
    %67 = vector.broadcast %cst_35 : f32 to vector<8x256xf32>
    %68 = arith.maximumf %66, %67 : vector<8x256xf32>
    %c0_36 = arith.constant 0 : index
    %c0_37 = arith.constant 0 : index
    %69 = vector.load %arg13[%c0_36, %c0_37] : memref<256x128xf32, #tpu.memory_space<vmem>>, vector<256x128xf32>
    %cst_38 = arith.constant dense<0.000000e+00> : vector<8x128xf32>
    %70 = tpu.matmul %68, %69, %cst_38 {dimension_numbers = #tpu.dot_dimension_numbers<[1], [0], [0], [1], [0, 0, 1, 1], [], []>} : vector<8x256xf32>, vector<256x128xf32>, vector<8x128xf32> -> vector<8x128xf32>
    %c0_39 = arith.constant 0 : index
    %c0_40 = arith.constant 0 : index
    %71 = vector.load %arg14[%c0_39, %c0_40] : memref<1x128xf32, #tpu.memory_space<vmem>>, vector<1x128xf32>
    %72 = vector.broadcast %71 : vector<1x128xf32> to vector<8x128xf32>
    %73 = arith.addf %70, %72 : vector<8x128xf32>
    %c0_41 = arith.constant 0 : index
    %c0_42 = arith.constant 0 : index
    %74 = vector.load %arg15[%c0_41, %c0_42] : memref<8x128xf32, #tpu.memory_space<vmem>>, vector<8x128xf32>
    tpu.vector_store %arg15[%c0_41, %c0_42], %73 {strides = array<i32>} : memref<8x128xf32, #tpu.memory_space<vmem>>, vector<8x128xf32>,
    return
  }
  func.func @transform_0(%arg0: i32) -> (i32, i32) {
    %c0_i32 = arith.constant 0 : i32
    %c0_i32_0 = arith.constant 0 : i32
    return %arg0, %c0_i32 : i32, i32
  }
  func.func @transform_1(%arg0: i32) -> (i32, i32) {
    %c0_i32 = arith.constant 0 : i32
    %c0_i32_0 = arith.constant 0 : i32
    return %arg0, %c0_i32 : i32, i32
  }
  func.func @transform_2(%arg0: i32) -> (i32, i32) {
    %c0_i32 = arith.constant 0 : i32
    %c0_i32_0 = arith.constant 0 : i32
    %c0_i32_1 = arith.constant 0 : i32
    return %c0_i32, %c0_i32_0 : i32, i32
  }
  func.func @transform_3(%arg0: i32) -> (i32, i32) {
    %c0_i32 = arith.constant 0 : i32
    %c0_i32_0 = arith.constant 0 : i32
    %c0_i32_1 = arith.constant 0 : i32
    return %c0_i32, %c0_i32_0 : i32, i32
  }
  func.func @transform_4(%arg0: i32) -> (i32, i32) {
    %c0_i32 = arith.constant 0 : i32
    %c0_i32_0 = arith.constant 0 : i32
    %c0_i32_1 = arith.constant 0 : i32
    return %c0_i32, %c0_i32_0 : i32, i32
  }
  func.func @transform_5(%arg0: i32) -> (i32, i32) {
    %c0_i32 = arith.constant 0 : i32
    %c0_i32_0 = arith.constant 0 : i32
    %c0_i32_1 = arith.constant 0 : i32
    return %c0_i32, %c0_i32_0 : i32, i32
  }
  func.func @transform_6(%arg0: i32) -> (i32, i32) {
    %c0_i32 = arith.constant 0 : i32
    %c0_i32_0 = arith.constant 0 : i32
    %c0_i32_1 = arith.constant 0 : i32
    return %c0_i32, %c0_i32_0 : i32, i32
  }
  func.func @transform_7(%arg0: i32) -> (i32, i32) {
    %c0_i32 = arith.constant 0 : i32
    %c0_i32_0 = arith.constant 0 : i32
    %c0_i32_1 = arith.constant 0 : i32
    return %c0_i32, %c0_i32_0 : i32, i32
  }
  func.func @transform_8(%arg0: i32) -> (i32, i32) {
    %c0_i32 = arith.constant 0 : i32
    %c0_i32_0 = arith.constant 0 : i32
    %c0_i32_1 = arith.constant 0 : i32
    return %c0_i32, %c0_i32_0 : i32, i32
  }
  func.func @transform_9(%arg0: i32) -> (i32, i32) {
    %c0_i32 = arith.constant 0 : i32
    %c0_i32_0 = arith.constant 0 : i32
    %c0_i32_1 = arith.constant 0 : i32
    return %c0_i32, %c0_i32_0 : i32, i32
  }
  func.func @transform_10(%arg0: i32) -> (i32, i32) {
    %c0_i32 = arith.constant 0 : i32
    %c0_i32_0 = arith.constant 0 : i32
    %c0_i32_1 = arith.constant 0 : i32
    return %c0_i32, %c0_i32_0 : i32, i32
  }
  func.func @transform_11(%arg0: i32) -> (i32, i32) {
    %c0_i32 = arith.constant 0 : i32
    %c0_i32_0 = arith.constant 0 : i32
    %c0_i32_1 = arith.constant 0 : i32
    return %c0_i32, %c0_i32_0 : i32, i32
  }
  func.func @transform_12(%arg0: i32) -> (i32, i32) {
    %c0_i32 = arith.constant 0 : i32
    %c0_i32_0 = arith.constant 0 : i32
    %c0_i32_1 = arith.constant 0 : i32
    return %c0_i32, %c0_i32_0 : i32, i32
  }
  func.func @transform_13(%arg0: i32) -> (i32, i32) {
    %c0_i32 = arith.constant 0 : i32
    %c0_i32_0 = arith.constant 0 : i32
    %c0_i32_1 = arith.constant 0 : i32
    return %c0_i32, %c0_i32_0 : i32, i32
  }
  func.func @transform_14(%arg0: i32) -> (i32, i32) {
    %c0_i32 = arith.constant 0 : i32
    %c0_i32_0 = arith.constant 0 : i32
    return %arg0, %c0_i32 : i32, i32
  }
}

</mosaic_0001>

<llo_original>
// kernel: model_head_forward.1
$region0: #{model_head_forward.1}
  #allocation0 [shape = 'u32[]', space=smem, size = 0x4, offset = 0x4, fixed_abs, tag = 'smem constant byte address 0x4 - core index']
  #allocation1 [shape = 'u32[144,128]{1,0:T(1,128)}', space=vmem, size = 0x12000, scoped, tag = 'internal scratch']
  %s0 = inlined_call_operand.vmem [shape: f32[64,128], index: 0, kind: input, shape index: {}]
  %s1 = inlined_call_operand.vmem [shape: f32[128,128], index: 1, kind: input, shape index: {}]
  %s2 = inlined_call_operand.vmem [shape: f32[128,128], index: 2, kind: input, shape index: {}]
  %s3 = inlined_call_operand.vmem [shape: f32[1,128], index: 3, kind: input, shape index: {}]
  %s4 = inlined_call_operand.vmem [shape: f32[1,128], index: 4, kind: input, shape index: {}]
  %s5 = inlined_call_operand.vmem [shape: f32[128,128], index: 5, kind: input, shape index: {}]
  %s6 = inlined_call_operand.vmem [shape: f32[1,128], index: 6, kind: input, shape index: {}]
  %s7 = inlined_call_operand.vmem [shape: f32[1,128], index: 7, kind: input, shape index: {}]
  %s8 = inlined_call_operand.vmem [shape: f32[384,256], index: 8, kind: input, shape index: {}]
  %s9 = inlined_call_operand.vmem [shape: f32[1,256], index: 9, kind: input, shape index: {}]
  %s10 = inlined_call_operand.vmem [shape: f32[256,256], index: 10, kind: input, shape index: {}]
  %s11 = inlined_call_operand.vmem [shape: f32[1,256], index: 11, kind: input, shape index: {}]
  %s12 = inlined_call_operand.vmem [shape: f32[256,128], index: 12, kind: input, shape index: {}]
  %s13 = inlined_call_operand.vmem [shape: f32[1,128], index: 13, kind: input, shape index: {}]
  %s14 = inlined_call_operand.vmem [shape: f32[8,128], index: 14, kind: output, shape index: {}]
  %s15 = sld [smem:[#allocation0]]
  $region66: #{model_head_forward.1} parent=0
    _
  %s17 = ssub.s32 1, %s15
  %s18 = scalar_select 0, %s17, %s15
  // Predicated region
  $region2: #{model_head_forward.1} parent=0 // pred_check
    _
  $region3: #{model_head_forward.1} parent=0 // pred_check_branch
    %20 = sbr.rel (0) target = $region5
  $region4: #{model_head_forward.1} parent=0 // pred_region
    _
  $region5: #{model_head_forward.1} parent=0 // pred_fallthru
    _
  // Predicated region
  $region6: #{model_head_forward.1} parent=0 // pred_check
    _
  $region7: #{model_head_forward.1} parent=0 // pred_check_branch
    %22 = sbr.rel (0) target = $region9
  $region8: #{model_head_forward.1} parent=0 // pred_region
    _
  $region9: #{model_head_forward.1} parent=0 // pred_fallthru
    _
  // Predicated region
  $region10: #{model_head_forward.1} parent=0 // pred_check
    _
  $region11: #{model_head_forward.1} parent=0 // pred_check_branch
    %24 = sbr.rel (0) target = $region13
  $region12: #{model_head_forward.1} parent=0 // pred_region
    _
  $region13: #{model_head_forward.1} parent=0 // pred_fallthru
    _
  // Predicated region
  $region14: #{model_head_forward.1} parent=0 // pred_check
    _
  $region15: #{model_head_forward.1} parent=0 // pred_check_branch
    %26 = sbr.rel (0) target = $region17
  $region16: #{model_head_forward.1} parent=0 // pred_region
    _
  $region17: #{model_head_forward.1} parent=0 // pred_fallthru
    _
  // Predicated region
  $region18: #{model_head_forward.1} parent=0 // pred_check
    _
  $region19: #{model_head_forward.1} parent=0 // pred_check_branch
    %28 = sbr.rel (0) target = $region21
  $region20: #{model_head_forward.1} parent=0 // pred_region
    _
  $region21: #{model_head_forward.1} parent=0 // pred_fallthru
    _
  // Predicated region
  $region22: #{model_head_forward.1} parent=0 // pred_check
    _
  $region23: #{model_head_forward.1} parent=0 // pred_check_branch
    %30 = sbr.rel (0) target = $region25
  $region24: #{model_head_forward.1} parent=0 // pred_region
    _
  $region25: #{model_head_forward.1} parent=0 // pred_fallthru
    _
  // Predicated region
  $region26: #{model_head_forward.1} parent=0 // pred_check
    _
  $region27: #{model_head_forward.1} parent=0 // pred_check_branch
    %32 = sbr.rel (0) target = $region29
  $region28: #{model_head_forward.1} parent=0 // pred_region
    _
  $region29: #{model_head_forward.1} parent=0 // pred_fallthru
    _
  // Predicated region
  $region30: #{model_head_forward.1} parent=0 // pred_check
    _
  $region31: #{model_head_forward.1} parent=0 // pred_check_branch
    %34 = sbr.rel (0) target = $region33
  $region32: #{model_head_forward.1} parent=0 // pred_region
    _
  $region33: #{model_head_forward.1} parent=0 // pred_fallthru
    _
  // Predicated region
  $region34: #{model_head_forward.1} parent=0 // pred_check
    _
  $region35: #{model_head_forward.1} parent=0 // pred_check_branch
    %36 = sbr.rel (0) target = $region37
  $region36: #{model_head_forward.1} parent=0 // pred_region
    _
  $region37: #{model_head_forward.1} parent=0 // pred_fallthru
    _
  // Predicated region
  $region38: #{model_head_forward.1} parent=0 // pred_check
    _
  $region39: #{model_head_forward.1} parent=0 // pred_check_branch
    %38 = sbr.rel (0) target = $region41
  $region40: #{model_head_forward.1} parent=0 // pred_region
    _
  $region41: #{model_head_forward.1} parent=0 // pred_fallthru
    _
  // Predicated region
  $region42: #{model_head_forward.1} parent=0 // pred_check
    _
  $region43: #{model_head_forward.1} parent=0 // pred_check_branch
    %40 = sbr.rel (0) target = $region45
  $region44: #{model_head_forward.1} parent=0 // pred_region
    _
  $region45: #{model_head_forward.1} parent=0 // pred_fallthru
    _
  // Predicated region
  $region46: #{model_head_forward.1} parent=0 // pred_check
    _
  $region47: #{model_head_forward.1} parent=0 // pred_check_branch
    %42 = sbr.rel (0) target = $region49
  $region48: #{model_head_forward.1} parent=0 // pred_region
    _
  $region49: #{model_head_forward.1} parent=0 // pred_fallthru
    _
  // Predicated region
  $region50: #{model_head_forward.1} parent=0 // pred_check
    _
  $region51: #{model_head_forward.1} parent=0 // pred_check_branch
    %44 = sbr.rel (0) target = $region53
  $region52: #{model_head_forward.1} parent=0 // pred_region
    _
  $region53: #{model_head_forward.1} parent=0 // pred_fallthru
    _
  // Predicated region
  $region54: #{model_head_forward.1} parent=0 // pred_check
    _
  $region55: #{model_head_forward.1} parent=0 // pred_check_branch
    %46 = sbr.rel (0) target = $region57
  $region56: #{model_head_forward.1} parent=0 // pred_region
    _
  $region57: #{model_head_forward.1} parent=0 // pred_fallthru
    _
  %v47 = vld [vmem:[%s0] sm:$0xff]
  %v48 = vld [vmem:[%s0 + $0x8] sm:$0xff]
  %v49 = vld [vmem:[%s0 + $0x10] sm:$0xff]
  %v50 = vld [vmem:[%s0 + $0x18] sm:$0xff]
  %v51 = vld [vmem:[%s0 + $0x20] sm:$0xff]
  %v52 = vld [vmem:[%s0 + $0x28] sm:$0xff]
  %v53 = vld [vmem:[%s0 + $0x30] sm:$0xff]
  %v54 = vld [vmem:[%s0 + $0x38] sm:$0xff]
  %v55 = vld [vmem:[%s2] sm:$0xff]
  %v56 = vld [vmem:[%s2 + $0x8] sm:$0xff]
  %v57 = vld [vmem:[%s2 + $0x10] sm:$0xff]
  %v58 = vld [vmem:[%s2 + $0x18] sm:$0xff]
  %v59 = vld [vmem:[%s2 + $0x20] sm:$0xff]
  %v60 = vld [vmem:[%s2 + $0x28] sm:$0xff]
  %v61 = vld [vmem:[%s2 + $0x30] sm:$0xff]
  %v62 = vld [vmem:[%s2 + $0x38] sm:$0xff]
  %v63 = vld [vmem:[%s2 + $0x40] sm:$0xff]
  %v64 = vld [vmem:[%s2 + $0x48] sm:$0xff]
  %v65 = vld [vmem:[%s2 + $0x50] sm:$0xff]
  %v66 = vld [vmem:[%s2 + $0x58] sm:$0xff]
  %v67 = vld [vmem:[%s2 + $0x60] sm:$0xff]
  %v68 = vld [vmem:[%s2 + $0x68] sm:$0xff]
  %v69 = vld [vmem:[%s2 + $0x70] sm:$0xff]
  %v70 = vld [vmem:[%s2 + $0x78] sm:$0xff]
  %v71 = vld [vmem:[%s3] sm:$0x1]
  %v72 = vld [vmem:[%s4] sm:$0x1]
  %v74 = vlaneseq
  %v75 = vshrl.u32 %v74, 7
  %v76 = vsub.s32 0, %v75
  %v77 = vrot.slane %v71, %v76
  %79 = vmatprep.subr.mxu0 0.0
  %80 = vmatpush1.msra.mxu0 %v55
  %81 = vmatprep.subr.mxu0 0.0
  %82 = vmatpush1.msra.mxu0 %v56
  %83 = vmatprep.subr.mxu0 0.0
  %84 = vmatpush1.msra.mxu0 %v57
  %85 = vmatprep.subr.mxu0 0.0
  %86 = vmatpush1.msra.mxu0 %v58
  %87 = vmatprep.subr.mxu0 0.0
  %88 = vmatpush1.msra.mxu0 %v59
  %89 = vmatprep.subr.mxu0 0.0
  %90 = vmatpush1.msra.mxu0 %v60
  %91 = vmatprep.subr.mxu0 0.0
  %92 = vmatpush1.msra.mxu0 %v61
  %93 = vmatprep.subr.mxu0 0.0
  %94 = vmatpush1.msra.mxu0 %v62
  %95 = vmatprep.subr.mxu0 0.0
  %96 = vmatpush1.msra.mxu0 %v63
  %97 = vmatprep.subr.mxu0 0.0
  %98 = vmatpush1.msra.mxu0 %v64
  %99 = vmatprep.subr.mxu0 0.0
  %100 = vmatpush1.msra.mxu0 %v65
  %101 = vmatprep.subr.mxu0 0.0
  %102 = vmatpush1.msra.mxu0 %v66
  %103 = vmatprep.subr.mxu0 0.0
  %104 = vmatpush1.msra.mxu0 %v67
  %105 = vmatprep.subr.mxu0 0.0
  %106 = vmatpush1.msra.mxu0 %v68
  %107 = vmatprep.subr.mxu0 0.0
  %108 = vmatpush1.msra.mxu0 %v69
  %109 = vmatprep.subr.mxu0 0.0
  %110 = vmatpush1.msra.mxu0 %v70
  %111 = vmatprep.subr.mxu0 0.0
  %112 = vmatpush1.msra.mxu0 0.0
  %113 = vmatprep.subr.mxu0 0.0
  %114 = vmatpush1.msra.mxu0 0.0
  %115 = vmatprep.subr.mxu0 0.0
  %116 = vmatpush1.msra.mxu0 0.0
  %117 = vmatprep.subr.mxu0 0.0
  %118 = vmatpush1.msra.mxu0 0.0
  %119 = vmatprep.subr.mxu0 0.0
  %120 = vmatpush1.msra.mxu0 0.0
  %121 = vmatprep.subr.mxu0 0.0
  %122 = vmatpush1.msra.mxu0 0.0
  %123 = vmatprep.subr.mxu0 0.0
  %124 = vmatpush1.msra.mxu0 0.0
  %125 = vmatprep.subr.mxu0 0.0
  %126 = vmatpush1.msra.mxu0 0.0
  %127 = vmatprep.subr.mxu0 0.0
  %128 = vmatpush1.msra.mxu0 0.0
  %129 = vmatprep.subr.mxu0 0.0
  %130 = vmatpush1.msra.mxu0 0.0
  %131 = vmatprep.subr.mxu0 0.0
  %132 = vmatpush1.msra.mxu0 0.0
  %133 = vmatprep.subr.mxu0 0.0
  %134 = vmatpush1.msra.mxu0 0.0
  %135 = vmatprep.subr.mxu0 0.0
  %136 = vmatpush1.msra.mxu0 0.0
  %137 = vmatprep.subr.mxu0 0.0
  %138 = vmatpush1.msra.mxu0 0.0
  %139 = vmatprep.subr.mxu0 0.0
  %140 = vmatpush1.msra.mxu0 0.0
  %141 = vmatprep.subr.mxu0 0.0
  %142 = vmatpush1.msra.mxu0 0.0
  %143 = vmatprep.mubr.f32.mxu0 0.0
  %144 = vmatmul.mubr.f32.gmra.mrb[0].mxu0 %v47
  %v145 = vpop.f32.mrb[0].mxu0
  %v146 = vadd.f32 %v77, %v145
  %v147 = vpop.f32.mrb[0].mxu0
  %148 = vmatprep.mubr.f32.mxu0 0.0
  %149 = vmatmul.mubr.f32.gmra.mrb[0].mxu0 %v48
  %v150 = vpop.f32.mrb[0].mxu0
  %v151 = vadd.f32 %v77, %v150
  %v152 = vpop.f32.mrb[0].mxu0
  %153 = vmatprep.mubr.f32.mxu0 0.0
  %154 = vmatmul.mubr.f32.gmra.mrb[0].mxu0 %v49
  %v155 = vpop.f32.mrb[0].mxu0
  %v156 = vadd.f32 %v77, %v155
  %v157 = vpop.f32.mrb[0].mxu0
  %158 = vmatprep.mubr.f32.mxu0 0.0
  %159 = vmatmul.mubr.f32.gmra.mrb[0].mxu0 %v50
  %v160 = vpop.f32.mrb[0].mxu0
  %v161 = vadd.f32 %v77, %v160
  %v162 = vpop.f32.mrb[0].mxu0
  %163 = vmatprep.mubr.f32.mxu0 0.0
  %164 = vmatmul.mubr.f32.gmra.mrb[0].mxu0 %v51
  %v165 = vpop.f32.mrb[0].mxu0
  %v166 = vadd.f32 %v77, %v165
  %v167 = vpop.f32.mrb[0].mxu0
  %168 = vmatprep.mubr.f32.mxu0 0.0
  %169 = vmatmul.mubr.f32.gmra.mrb[0].mxu0 %v52
  %v170 = vpop.f32.mrb[0].mxu0
  %v171 = vadd.f32 %v77, %v170
  %v172 = vpop.f32.mrb[0].mxu0
  %173 = vmatprep.mubr.f32.mxu0 0.0
  %174 = vmatmul.mubr.f32.gmra.mrb[0].mxu0 %v53
  %v175 = vpop.f32.mrb[0].mxu0
  %v176 = vadd.f32 %v77, %v175
  %v177 = vpop.f32.mrb[0].mxu0
  %178 = vmatprep.mubr.f32.mxu0 0.0
  %179 = vmatmul.mubr.f32.gmra.mrb[0].mxu0 %v54
  %v180 = vpop.f32.mrb[0].mxu0
  %v181 = vadd.f32 %v77, %v180
  %v182 = vpop.f32.mrb[0].mxu0
  %183 = vdwg.mxu0
  %v185 = vlaneseq
  %v186 = vshrl.u32 %v185, 7
  %v187 = vsub.s32 0, %v186
  %v188 = vrot.slane %v72, %v187
  %v190 = vmul.f32 %v146, %v188
  %v191 = vmul.f32 %v151, %v188
  %v192 = vmul.f32 %v156, %v188
  %v193 = vmul.f32 %v161, %v188
  %v194 = vmul.f32 %v166, %v188
  %v195 = vmul.f32 %v171, %v188
  %v196 = vmul.f32 %v176, %v188
  %v197 = vmul.f32 %v181, %v188
  %198 = vadd.xlane.f32.xlu0 %v190
  %v199 = vpop.xlane.xlu0 %198
  %200 = vadd.xlane.f32.xlu0 %v191
  %v201 = vpop.xlane.xlu0 %200
  %202 = vadd.xlane.f32.xlu0 %v192
  %v203 = vpop.xlane.xlu0 %202
  %204 = vadd.xlane.f32.xlu0 %v193
  %v205 = vpop.xlane.xlu0 %204
  %206 = vadd.xlane.f32.xlu0 %v194
  %v207 = vpop.xlane.xlu0 %206
  %208 = vadd.xlane.f32.xlu0 %v195
  %v209 = vpop.xlane.xlu0 %208
  %210 = vadd.xlane.f32.xlu0 %v196
  %v211 = vpop.xlane.xlu0 %210
  %212 = vadd.xlane.f32.xlu0 %v197
  %v213 = vpop.xlane.xlu0 %212
  %v222 = vlaneseq
  %v223 = vand.u32 %v222, 127
  %v224 = vlaneseq
  %v225 = vshrl.u32 %v224, 7
  %v226 = vsub.s32 %v223, %v225
  %v227 = vrot.slane %v199, %v226
  %v228 = vlaneseq
  %v229 = vshrl.u32 %v228, 7
  %v230 = vsub.s32 %v223, %v229
  %v231 = vrot.slane %v201, %v230
  %v232 = vlaneseq
  %v233 = vshrl.u32 %v232, 7
  %v234 = vsub.s32 %v223, %v233
  %v235 = vrot.slane %v203, %v234
  %v236 = vlaneseq
  %v237 = vshrl.u32 %v236, 7
  %v238 = vsub.s32 %v223, %v237
  %v239 = vrot.slane %v205, %v238
  %v240 = vlaneseq
  %v241 = vshrl.u32 %v240, 7
  %v242 = vsub.s32 %v223, %v241
  %v243 = vrot.slane %v207, %v242
  %v244 = vlaneseq
  %v245 = vshrl.u32 %v244, 7
  %v246 = vsub.s32 %v223, %v245
  %v247 = vrot.slane %v209, %v246
  %v248 = vlaneseq
  %v249 = vshrl.u32 %v248, 7
  %v250 = vsub.s32 %v223, %v249
  %v251 = vrot.slane %v211, %v250
  %v252 = vlaneseq
  %v253 = vshrl.u32 %v252, 7
  %v254 = vsub.s32 %v223, %v253
  %v255 = vrot.slane %v213, %v254
  %vm256 = vcmask 1041409
  %v257 = vsel %vm256, %v231, %v227
  %vm258 = vcmask 1042434
  %v259 = vsel %vm258, %v235, %v257
  %vm260 = vcmask 1043459
  %v261 = vsel %vm260, %v239, %v259
  %vm262 = vcmask 1044484
  %v263 = vsel %vm262, %v243, %v261
  %vm264 = vcmask 1045509
  %v265 = vsel %vm264, %v247, %v263
  %vm266 = vcmask 1046534
  %v267 = vsel %vm266, %v251, %v265
  %vm268 = vcmask 1047559
  %v269 = vsel %vm268, %v255, %v267
  %vm271 = vcmask 64512
  %v272 = vsel %vm271, %v269, -inf
  %273 = vmax.xlane.f32.xlu0 %v272
  %v274 = vpop.xlane.xlu0 %273
  %v276 = vlaneseq
  %v277 = vshrl.u32 %v276, 7
  %v278 = vsub.s32 0, %v277
  %v279 = vrot.slane %v274, %v278
  %v280 = vlaneseq
  %v281 = vshrl.u32 %v280, 7
  %v282 = vsub.s32 1, %v281
  %v283 = vrot.slane %v274, %v282
  %v284 = vlaneseq
  %v285 = vshrl.u32 %v284, 7
  %v286 = vsub.s32 2, %v285
  %v287 = vrot.slane %v274, %v286
  %v288 = vlaneseq
  %v289 = vshrl.u32 %v288, 7
  %v290 = vsub.s32 3, %v289
  %v291 = vrot.slane %v274, %v290
  %v292 = vlaneseq
  %v293 = vshrl.u32 %v292, 7
  %v294 = vsub.s32 4, %v293
  %v295 = vrot.slane %v274, %v294
  %v296 = vlaneseq
  %v297 = vshrl.u32 %v296, 7
  %v298 = vsub.s32 5, %v297
  %v299 = vrot.slane %v274, %v298
  %v300 = vlaneseq
  %v301 = vshrl.u32 %v300, 7
  %v302 = vsub.s32 6, %v301
  %v303 = vrot.slane %v274, %v302
  %v304 = vlaneseq
  %v305 = vshrl.u32 %v304, 7
  %v306 = vsub.s32 7, %v305
  %v307 = vrot.slane %v274, %v306
  %v316 = vsub.f32 %v199, %v279
  %v317 = vsub.f32 %v201, %v283
  %v318 = vsub.f32 %v203, %v287
  %v319 = vsub.f32 %v205, %v291
  %v320 = vsub.f32 %v207, %v295
  %v321 = vsub.f32 %v209, %v299
  %v322 = vsub.f32 %v211, %v303
  %v323 = vsub.f32 %v213, %v307
  %v324 = vmul.f32 %v316, 1.442695
  %v325 = vpow.pop %v324
  %v326 = vmul.f32 %v317, 1.442695
  %v327 = vpow.pop %v326
  %v328 = vmul.f32 %v318, 1.442695
  %v329 = vpow.pop %v328
  %v330 = vmul.f32 %v319, 1.442695
  %v331 = vpow.pop %v330
  %v332 = vmul.f32 %v320, 1.442695
  %v333 = vpow.pop %v332
  %v334 = vmul.f32 %v321, 1.442695
  %v335 = vpow.pop %v334
  %v336 = vmul.f32 %v322, 1.442695
  %v337 = vpow.pop %v336
  %v338 = vmul.f32 %v323, 1.442695
  %v339 = vpow.pop %v338
  %348 = vset.pattern.permute.xlu0 0
  %349 = vperm.xlu0 %348, %v325
  %v350 = vpop.permute.xlu0 %349
  %351 = vset.pattern.permute.xlu0 0
  %352 = vperm.xlu0 %351, %v327
  %v353 = vpop.permute.xlu0 %352
  %354 = vset.pattern.permute.xlu0 0
  %355 = vperm.xlu0 %354, %v329
  %v356 = vpop.permute.xlu0 %355
  %357 = vset.pattern.permute.xlu0 0
  %358 = vperm.xlu0 %357, %v331
  %v359 = vpop.permute.xlu0 %358
  %360 = vset.pattern.permute.xlu0 0
  %361 = vperm.xlu0 %360, %v333
  %v362 = vpop.permute.xlu0 %361
  %363 = vset.pattern.permute.xlu0 0
  %364 = vperm.xlu0 %363, %v335
  %v365 = vpop.permute.xlu0 %364
  %366 = vset.pattern.permute.xlu0 0
  %367 = vperm.xlu0 %366, %v337
  %v368 = vpop.permute.xlu0 %367
  %369 = vset.pattern.permute.xlu0 0
  %370 = vperm.xlu0 %369, %v339
  %v371 = vpop.permute.xlu0 %370
  %v372 = vlaneseq
  %v373 = vshrl.u32 %v372, 7
  %v374 = vsub.s32 %v223, %v373
  %v375 = vrot.slane %v350, %v374
  %v376 = vlaneseq
  %v377 = vshrl.u32 %v376, 7
  %v378 = vsub.s32 %v223, %v377
  %v379 = vrot.slane %v353, %v378
  %v380 = vlaneseq
  %v381 = vshrl.u32 %v380, 7
  %v382 = vsub.s32 %v223, %v381
  %v383 = vrot.slane %v356, %v382
  %v384 = vlaneseq
  %v385 = vshrl.u32 %v384, 7
  %v386 = vsub.s32 %v223, %v385
  %v387 = vrot.slane %v359, %v386
  %v388 = vlaneseq
  %v389 = vshrl.u32 %v388, 7
  %v390 = vsub.s32 %v223, %v389
  %v391 = vrot.slane %v362, %v390
  %v392 = vlaneseq
  %v393 = vshrl.u32 %v392, 7
  %v394 = vsub.s32 %v223, %v393
  %v395 = vrot.slane %v365, %v394
  %v396 = vlaneseq
  %v397 = vshrl.u32 %v396, 7
  %v398 = vsub.s32 %v223, %v397
  %v399 = vrot.slane %v368, %v398
  %v400 = vlaneseq
  %v401 = vshrl.u32 %v400, 7
  %v402 = vsub.s32 %v223, %v401
  %v403 = vrot.slane %v371, %v402
  %v404 = vsel %vm256, %v379, %v375
  %v405 = vsel %vm258, %v383, %v404
  %v406 = vsel %vm260, %v387, %v405
  %v407 = vsel %vm262, %v391, %v406
  %v408 = vsel %vm264, %v395, %v407
  %v409 = vsel %vm266, %v399, %v408
  %v410 = vsel %vm268, %v403, %v409
  %v412 = vsel %vm271, %v410, 0.0
  %413 = vadd.xlane.f32.xlu0 %v412
  %v414 = vpop.xlane.xlu0 %413
  %v415 = vrcp.pop %v414
  %v417 = vlaneseq
  %v418 = vshrl.u32 %v417, 7
  %v419 = vsub.s32 0, %v418
  %v420 = vrot.slane %v415, %v419
  %v421 = vlaneseq
  %v422 = vshrl.u32 %v421, 7
  %v423 = vsub.s32 1, %v422
  %v424 = vrot.slane %v415, %v423
  %v425 = vlaneseq
  %v426 = vshrl.u32 %v425, 7
  %v427 = vsub.s32 2, %v426
  %v428 = vrot.slane %v415, %v427
  %v429 = vlaneseq
  %v430 = vshrl.u32 %v429, 7
  %v431 = vsub.s32 3, %v430
  %v432 = vrot.slane %v415, %v431
  %v433 = vlaneseq
  %v434 = vshrl.u32 %v433, 7
  %v435 = vsub.s32 4, %v434
  %v436 = vrot.slane %v415, %v435
  %v437 = vlaneseq
  %v438 = vshrl.u32 %v437, 7
  %v439 = vsub.s32 5, %v438
  %v440 = vrot.slane %v415, %v439
  %v441 = vlaneseq
  %v442 = vshrl.u32 %v441, 7
  %v443 = vsub.s32 6, %v442
  %v444 = vrot.slane %v415, %v443
  %v445 = vlaneseq
  %v446 = vshrl.u32 %v445, 7
  %v447 = vsub.s32 7, %v446
  %v448 = vrot.slane %v415, %v447
  %v457 = vmul.f32 %v325, %v420
  %v458 = vmul.f32 %v327, %v424
  %v459 = vmul.f32 %v329, %v428
  %v460 = vmul.f32 %v331, %v432
  %v461 = vmul.f32 %v333, %v436
  %v462 = vmul.f32 %v335, %v440
  %v463 = vmul.f32 %v337, %v444
  %v464 = vmul.f32 %v339, %v448
  %466 = vset.pattern.permute.xlu0 0
  %467 = vperm.xlu0 %466, %v457
  %v468 = vpop.permute.xlu0 %467
  %471 = vset.pattern.permute.xlu0 0
  %472 = vperm.xlu0 %471, %v458
  %v473 = vpop.permute.xlu0 %472
  %476 = vset.pattern.permute.xlu0 0
  %477 = vperm.xlu0 %476, %v459
  %v478 = vpop.permute.xlu0 %477
  %481 = vset.pattern.permute.xlu0 0
  %482 = vperm.xlu0 %481, %v460
  %v483 = vpop.permute.xlu0 %482
  %486 = vset.pattern.permute.xlu0 0
  %487 = vperm.xlu0 %486, %v461
  %v488 = vpop.permute.xlu0 %487
  %491 = vset.pattern.permute.xlu0 0
  %492 = vperm.xlu0 %491, %v462
  %v493 = vpop.permute.xlu0 %492
  %496 = vset.pattern.permute.xlu0 0
  %497 = vperm.xlu0 %496, %v463
  %v498 = vpop.permute.xlu0 %497
  %501 = vset.pattern.permute.xlu0 0
  %502 = vperm.xlu0 %501, %v464
  %v503 = vpop.permute.xlu0 %502
  %v505 = vmul.f32 %v146, %v468
  %v506 = vmul.f32 %v151, %v473
  %v507 = vmul.f32 %v156, %v478
  %v508 = vmul.f32 %v161, %v483
  %v509 = vmul.f32 %v166, %v488
  %v510 = vmul.f32 %v171, %v493
  %v511 = vmul.f32 %v176, %v498
  %v512 = vmul.f32 %v181, %v503
  %v513 = vrot.slane %v505, 4
  %v514 = vadd.f32 %v505, %v513
  %v515 = vrot.slane %v514, 2
  %v516 = vadd.f32 %v514, %v515
  %v517 = vrot.slane %v516, 1
  %v518 = vadd.f32 %v516, %v517
  %v519 = vrot.slane %v506, 4
  %v520 = vadd.f32 %v506, %v519
  %v521 = vrot.slane %v520, 2
  %v522 = vadd.f32 %v520, %v521
  %v523 = vrot.slane %v522, 1
  %v524 = vadd.f32 %v522, %v523
  %v525 = vrot.slane %v507, 4
  %v526 = vadd.f32 %v507, %v525
  %v527 = vrot.slane %v526, 2
  %v528 = vadd.f32 %v526, %v527
  %v529 = vrot.slane %v528, 1
  %v530 = vadd.f32 %v528, %v529
  %v531 = vrot.slane %v508, 4
  %v532 = vadd.f32 %v508, %v531
  %v533 = vrot.slane %v532, 2
  %v534 = vadd.f32 %v532, %v533
  %v535 = vrot.slane %v534, 1
  %v536 = vadd.f32 %v534, %v535
  %v537 = vrot.slane %v509, 4
  %v538 = vadd.f32 %v509, %v537
  %v539 = vrot.slane %v538, 2
  %v540 = vadd.f32 %v538, %v539
  %v541 = vrot.slane %v540, 1
  %v542 = vadd.f32 %v540, %v541
  %v543 = vrot.slane %v510, 4
  %v544 = vadd.f32 %v510, %v543
  %v545 = vrot.slane %v544, 2
  %v546 = vadd.f32 %v544, %v545
  %v547 = vrot.slane %v546, 1
  %v548 = vadd.f32 %v546, %v547
  %v549 = vrot.slane %v511, 4
  %v550 = vadd.f32 %v511, %v549
  %v551 = vrot.slane %v550, 2
  %v552 = vadd.f32 %v550, %v551
  %v553 = vrot.slane %v552, 1
  %v554 = vadd.f32 %v552, %v553
  %v555 = vrot.slane %v512, 4
  %v556 = vadd.f32 %v512, %v555
  %v557 = vrot.slane %v556, 2
  %v558 = vadd.f32 %v556, %v557
  %v559 = vrot.slane %v558, 1
  %v560 = vadd.f32 %v558, %v559
  %v561 = vld [vmem:[%s1] sm:$0xff]
  %v562 = vld [vmem:[%s1 + $0x8] sm:$0xff]
  %v563 = vld [vmem:[%s1 + $0x10] sm:$0xff]
  %v564 = vld [vmem:[%s1 + $0x18] sm:$0xff]
  %v565 = vld [vmem:[%s1 + $0x20] sm:$0xff]
  %v566 = vld [vmem:[%s1 + $0x28] sm:$0xff]
  %v567 = vld [vmem:[%s1 + $0x30] sm:$0xff]
  %v568 = vld [vmem:[%s1 + $0x38] sm:$0xff]
  %v569 = vld [vmem:[%s1 + $0x40] sm:$0xff]
  %v570 = vld [vmem:[%s1 + $0x48] sm:$0xff]
  %v571 = vld [vmem:[%s1 + $0x50] sm:$0xff]
  %v572 = vld [vmem:[%s1 + $0x58] sm:$0xff]
  %v573 = vld [vmem:[%s1 + $0x60] sm:$0xff]
  %v574 = vld [vmem:[%s1 + $0x68] sm:$0xff]
  %v575 = vld [vmem:[%s1 + $0x70] sm:$0xff]
  %v576 = vld [vmem:[%s1 + $0x78] sm:$0xff]
  %v577 = vld [vmem:[%s5] sm:$0xff]
  %v578 = vld [vmem:[%s5 + $0x8] sm:$0xff]
  %v579 = vld [vmem:[%s5 + $0x10] sm:$0xff]
  %v580 = vld [vmem:[%s5 + $0x18] sm:$0xff]
  %v581 = vld [vmem:[%s5 + $0x20] sm:$0xff]
  %v582 = vld [vmem:[%s5 + $0x28] sm:$0xff]
  %v583 = vld [vmem:[%s5 + $0x30] sm:$0xff]
  %v584 = vld [vmem:[%s5 + $0x38] sm:$0xff]
  %v585 = vld [vmem:[%s5 + $0x40] sm:$0xff]
  %v586 = vld [vmem:[%s5 + $0x48] sm:$0xff]
  %v587 = vld [vmem:[%s5 + $0x50] sm:$0xff]
  %v588 = vld [vmem:[%s5 + $0x58] sm:$0xff]
  %v589 = vld [vmem:[%s5 + $0x60] sm:$0xff]
  %v590 = vld [vmem:[%s5 + $0x68] sm:$0xff]
  %v591 = vld [vmem:[%s5 + $0x70] sm:$0xff]
  %v592 = vld [vmem:[%s5 + $0x78] sm:$0xff]
  %v593 = vld [vmem:[%s6] sm:$0x1]
  %v594 = vld [vmem:[%s7] sm:$0x1]
  %v596 = vlaneseq
  %v597 = vshrl.u32 %v596, 7
  %v598 = vsub.s32 0, %v597
  %v599 = vrot.slane %v593, %v598
  %601 = vmatprep.subr.mxu0 0.0
  %602 = vmatpush1.msra.mxu0 %v577
  %603 = vmatprep.subr.mxu0 0.0
  %604 = vmatpush1.msra.mxu0 %v578
  %605 = vmatprep.subr.mxu0 0.0
  %606 = vmatpush1.msra.mxu0 %v579
  %607 = vmatprep.subr.mxu0 0.0
  %608 = vmatpush1.msra.mxu0 %v580
  %609 = vmatprep.subr.mxu0 0.0
  %610 = vmatpush1.msra.mxu0 %v581
  %611 = vmatprep.subr.mxu0 0.0
  %612 = vmatpush1.msra.mxu0 %v582
  %613 = vmatprep.subr.mxu0 0.0
  %614 = vmatpush1.msra.mxu0 %v583
  %615 = vmatprep.subr.mxu0 0.0
  %616 = vmatpush1.msra.mxu0 %v584
  %617 = vmatprep.subr.mxu0 0.0
  %618 = vmatpush1.msra.mxu0 %v585
  %619 = vmatprep.subr.mxu0 0.0
  %620 = vmatpush1.msra.mxu0 %v586
  %621 = vmatprep.subr.mxu0 0.0
  %622 = vmatpush1.msra.mxu0 %v587
  %623 = vmatprep.subr.mxu0 0.0
  %624 = vmatpush1.msra.mxu0 %v588
  %625 = vmatprep.subr.mxu0 0.0
  %626 = vmatpush1.msra.mxu0 %v589
  %627 = vmatprep.subr.mxu0 0.0
  %628 = vmatpush1.msra.mxu0 %v590
  %629 = vmatprep.subr.mxu0 0.0
  %630 = vmatpush1.msra.mxu0 %v591
  %631 = vmatprep.subr.mxu0 0.0
  %632 = vmatpush1.msra.mxu0 %v592
  %633 = vmatprep.subr.mxu0 0.0
  %634 = vmatpush1.msra.mxu0 0.0
  %635 = vmatprep.subr.mxu0 0.0
  %636 = vmatpush1.msra.mxu0 0.0
  %637 = vmatprep.subr.mxu0 0.0
  %638 = vmatpush1.msra.mxu0 0.0
  %639 = vmatprep.subr.mxu0 0.0
  %640 = vmatpush1.msra.mxu0 0.0
  %641 = vmatprep.subr.mxu0 0.0
  %642 = vmatpush1.msra.mxu0 0.0
  %643 = vmatprep.subr.mxu0 0.0
  %644 = vmatpush1.msra.mxu0 0.0
  %645 = vmatprep.subr.mxu0 0.0
  %646 = vmatpush1.msra.mxu0 0.0
  %647 = vmatprep.subr.mxu0 0.0
  %648 = vmatpush1.msra.mxu0 0.0
  %649 = vmatprep.subr.mxu0 0.0
  %650 = vmatpush1.msra.mxu0 0.0
  %651 = vmatprep.subr.mxu0 0.0
  %652 = vmatpush1.msra.mxu0 0.0
  %653 = vmatprep.subr.mxu0 0.0
  %654 = vmatpush1.msra.mxu0 0.0
  %655 = vmatprep.subr.mxu0 0.0
  %656 = vmatpush1.msra.mxu0 0.0
  %657 = vmatprep.subr.mxu0 0.0
  %658 = vmatpush1.msra.mxu0 0.0
  %659 = vmatprep.subr.mxu0 0.0
  %660 = vmatpush1.msra.mxu0 0.0
  %661 = vmatprep.subr.mxu0 0.0
  %662 = vmatpush1.msra.mxu0 0.0
  %663 = vmatprep.subr.mxu0 0.0
  %664 = vmatpush1.msra.mxu0 0.0
  %665 = vmatprep.mubr.f32.mxu0 0.0
  %666 = vmatmul.mubr.f32.gmra.mrb[0].mxu0 %v561
  %v667 = vpop.f32.mrb[0].mxu0
  %v668 = vadd.f32 %v599, %v667
  %v669 = vpop.f32.mrb[0].mxu0
  %670 = vmatprep.mubr.f32.mxu0 0.0
  %671 = vmatmul.mubr.f32.gmra.mrb[0].mxu0 %v562
  %v672 = vpop.f32.mrb[0].mxu0
  %v673 = vadd.f32 %v599, %v672
  %v674 = vpop.f32.mrb[0].mxu0
  %675 = vmatprep.mubr.f32.mxu0 0.0
  %676 = vmatmul.mubr.f32.gmra.mrb[0].mxu0 %v563
  %v677 = vpop.f32.mrb[0].mxu0
  %v678 = vadd.f32 %v599, %v677
  %v679 = vpop.f32.mrb[0].mxu0
  %680 = vmatprep.mubr.f32.mxu0 0.0
  %681 = vmatmul.mubr.f32.gmra.mrb[0].mxu0 %v564
  %v682 = vpop.f32.mrb[0].mxu0
  %v683 = vadd.f32 %v599, %v682
  %v684 = vpop.f32.mrb[0].mxu0
  %685 = vmatprep.mubr.f32.mxu0 0.0
  %686 = vmatmul.mubr.f32.gmra.mrb[0].mxu0 %v565
  %v687 = vpop.f32.mrb[0].mxu0
  %v688 = vadd.f32 %v599, %v687
  %v689 = vpop.f32.mrb[0].mxu0
  %690 = vmatprep.mubr.f32.mxu0 0.0
  %691 = vmatmul.mubr.f32.gmra.mrb[0].mxu0 %v566
  %v692 = vpop.f32.mrb[0].mxu0
  %v693 = vadd.f32 %v599, %v692
  %v694 = vpop.f32.mrb[0].mxu0
  %695 = vmatprep.mubr.f32.mxu0 0.0
  %696 = vmatmul.mubr.f32.gmra.mrb[0].mxu0 %v567
  %v697 = vpop.f32.mrb[0].mxu0
  %v698 = vadd.f32 %v599, %v697
  %v699 = vpop.f32.mrb[0].mxu0
  %700 = vmatprep.mubr.f32.mxu0 0.0
  %701 = vmatmul.mubr.f32.gmra.mrb[0].mxu0 %v568
  %v702 = vpop.f32.mrb[0].mxu0
  %v703 = vadd.f32 %v599, %v702
  %v704 = vpop.f32.mrb[0].mxu0
  %705 = vmatprep.mubr.f32.mxu0 0.0
  %706 = vmatmul.mubr.f32.gmra.mrb[0].mxu0 %v569
  %v707 = vpop.f32.mrb[0].mxu0
  %v708 = vadd.f32 %v599, %v707
  %v709 = vpop.f32.mrb[0].mxu0
  %710 = vmatprep.mubr.f32.mxu0 0.0
  %711 = vmatmul.mubr.f32.gmra.mrb[0].mxu0 %v570
  %v712 = vpop.f32.mrb[0].mxu0
  %v713 = vadd.f32 %v599, %v712
  %v714 = vpop.f32.mrb[0].mxu0
  %715 = vmatprep.mubr.f32.mxu0 0.0
  %716 = vmatmul.mubr.f32.gmra.mrb[0].mxu0 %v571
  %v717 = vpop.f32.mrb[0].mxu0
  %v718 = vadd.f32 %v599, %v717
  %v719 = vpop.f32.mrb[0].mxu0
  %720 = vmatprep.mubr.f32.mxu0 0.0
  %721 = vmatmul.mubr.f32.gmra.mrb[0].mxu0 %v572
  %v722 = vpop.f32.mrb[0].mxu0
  %v723 = vadd.f32 %v599, %v722
  %v724 = vpop.f32.mrb[0].mxu0
  %725 = vmatprep.mubr.f32.mxu0 0.0
  %726 = vmatmul.mubr.f32.gmra.mrb[0].mxu0 %v573
  %v727 = vpop.f32.mrb[0].mxu0
  %v728 = vadd.f32 %v599, %v727
  %v729 = vpop.f32.mrb[0].mxu0
  %730 = vmatprep.mubr.f32.mxu0 0.0
  %731 = vmatmul.mubr.f32.gmra.mrb[0].mxu0 %v574
  %v732 = vpop.f32.mrb[0].mxu0
  %v733 = vadd.f32 %v599, %v732
  %v734 = vpop.f32.mrb[0].mxu0
  %735 = vmatprep.mubr.f32.mxu0 0.0
  %736 = vmatmul.mubr.f32.gmra.mrb[0].mxu0 %v575
  %v737 = vpop.f32.mrb[0].mxu0
  %v738 = vadd.f32 %v599, %v737
  %v739 = vpop.f32.mrb[0].mxu0
  %740 = vmatprep.mubr.f32.mxu0 0.0
  %741 = vmatmul.mubr.f32.gmra.mrb[0].mxu0 %v576
  %v742 = vpop.f32.mrb[0].mxu0
  %v743 = vadd.f32 %v599, %v742
  %v744 = vpop.f32.mrb[0].mxu0
  %745 = vdwg.mxu0
  %v747 = vlaneseq
  %v748 = vshrl.u32 %v747, 7
  %v749 = vsub.s32 0, %v748
  %v750 = vrot.slane %v594, %v749
  %v752 = vmul.f32 %v668, %v750
  %v753 = vmul.f32 %v673, %v750
  %v754 = vmul.f32 %v678, %v750
  %v755 = vmul.f32 %v683, %v750
  %v756 = vmul.f32 %v688, %v750
  %v757 = vmul.f32 %v693, %v750
  %v758 = vmul.f32 %v698, %v750
  %v759 = vmul.f32 %v703, %v750
  %v760 = vmul.f32 %v708, %v750
  %v761 = vmul.f32 %v713, %v750
  %v762 = vmul.f32 %v718, %v750
  %v763 = vmul.f32 %v723, %v750
  %v764 = vmul.f32 %v728, %v750
  %v765 = vmul.f32 %v733, %v750
  %v766 = vmul.f32 %v738, %v750
  %v767 = vmul.f32 %v743, %v750
  %768 = vadd.xlane.f32.xlu0 %v752
  %v769 = vpop.xlane.xlu0 %768
  %770 = vadd.xlane.f32.xlu0 %v753
  %v771 = vpop.xlane.xlu0 %770
  %772 = vadd.xlane.f32.xlu0 %v754
  %v773 = vpop.xlane.xlu0 %772
  %774 = vadd.xlane.f32.xlu0 %v755
  %v775 = vpop.xlane.xlu0 %774
  %776 = vadd.xlane.f32.xlu0 %v756
  %v777 = vpop.xlane.xlu0 %776
  %778 = vadd.xlane.f32.xlu0 %v757
  %v779 = vpop.xlane.xlu0 %778
  %780 = vadd.xlane.f32.xlu0 %v758
  %v781 = vpop.xlane.xlu0 %780
  %782 = vadd.xlane.f32.xlu0 %v759
  %v783 = vpop.xlane.xlu0 %782
  %784 = vadd.xlane.f32.xlu0 %v760
  %v785 = vpop.xlane.xlu0 %784
  %786 = vadd.xlane.f32.xlu0 %v761
  %v787 = vpop.xlane.xlu0 %786
  %788 = vadd.xlane.f32.xlu0 %v762
  %v789 = vpop.xlane.xlu0 %788
  %790 = vadd.xlane.f32.xlu0 %v763
  %v791 = vpop.xlane.xlu0 %790
  %792 = vadd.xlane.f32.xlu0 %v764
  %v793 = vpop.xlane.xlu0 %792
  %794 = vadd.xlane.f32.xlu0 %v765
  %v795 = vpop.xlane.xlu0 %794
  %796 = vadd.xlane.f32.xlu0 %v766
  %v797 = vpop.xlane.xlu0 %796
  %798 = vadd.xlane.f32.xlu0 %v767
  %v799 = vpop.xlane.xlu0 %798
  %v816 = vlaneseq
  %v817 = vshrl.u32 %v816, 7
  %v818 = vsub.s32 %v223, %v817
  %v819 = vrot.slane %v769, %v818
  %v820 = vlaneseq
  %v821 = vshrl.u32 %v820, 7
  %v822 = vsub.s32 %v223, %v821
  %v823 = vrot.slane %v771, %v822
  %v824 = vlaneseq
  %v825 = vshrl.u32 %v824, 7
  %v826 = vsub.s32 %v223, %v825
  %v827 = vrot.slane %v773, %v826
  %v828 = vlaneseq
  %v829 = vshrl.u32 %v828, 7
  %v830 = vsub.s32 %v223, %v829
  %v831 = vrot.slane %v775, %v830
  %v832 = vlaneseq
  %v833 = vshrl.u32 %v832, 7
  %v834 = vsub.s32 %v223, %v833
  %v835 = vrot.slane %v777, %v834
  %v836 = vlaneseq
  %v837 = vshrl.u32 %v836, 7
  %v838 = vsub.s32 %v223, %v837
  %v839 = vrot.slane %v779, %v838
  %v840 = vlaneseq
  %v841 = vshrl.u32 %v840, 7
  %v842 = vsub.s32 %v223, %v841
  %v843 = vrot.slane %v781, %v842
  %v844 = vlaneseq
  %v845 = vshrl.u32 %v844, 7
  %v846 = vsub.s32 %v223, %v845
  %v847 = vrot.slane %v783, %v846
  %v848 = vlaneseq
  %v849 = vshrl.u32 %v848, 7
  %v850 = vsub.s32 %v223, %v849
  %v851 = vrot.slane %v785, %v850
  %v852 = vlaneseq
  %v853 = vshrl.u32 %v852, 7
  %v854 = vsub.s32 %v223, %v853
  %v855 = vrot.slane %v787, %v854
  %v856 = vlaneseq
  %v857 = vshrl.u32 %v856, 7
  %v858 = vsub.s32 %v223, %v857
  %v859 = vrot.slane %v789, %v858
  %v860 = vlaneseq
  %v861 = vshrl.u32 %v860, 7
  %v862 = vsub.s32 %v223, %v861
  %v863 = vrot.slane %v791, %v862
  %v864 = vlaneseq
  %v865 = vshrl.u32 %v864, 7
  %v866 = vsub.s32 %v223, %v865
  %v867 = vrot.slane %v793, %v866
  %v868 = vlaneseq
  %v869 = vshrl.u32 %v868, 7
  %v870 = vsub.s32 %v223, %v869
  %v871 = vrot.slane %v795, %v870
  %v872 = vlaneseq
  %v873 = vshrl.u32 %v872, 7
  %v874 = vsub.s32 %v223, %v873
  %v875 = vrot.slane %v797, %v874
  %v876 = vlaneseq
  %v877 = vshrl.u32 %v876, 7
  %v878 = vsub.s32 %v223, %v877
  %v879 = vrot.slane %v799, %v878
  %v880 = vsel %vm256, %v823, %v819
  %v881 = vsel %vm258, %v827, %v880
  %v882 = vsel %vm260, %v831, %v881
  %v883 = vsel %vm262, %v835, %v882
  %v884 = vsel %vm264, %v839, %v883
  %v885 = vsel %vm266, %v843, %v884
  %v886 = vsel %vm268, %v847, %v885
  %v887 = vsel %vm256, %v855, %v851
  %v888 = vsel %vm258, %v859, %v887
  %v889 = vsel %vm260, %v863, %v888
  %v890 = vsel %vm262, %v867, %v889
  %v891 = vsel %vm264, %v871, %v890
  %v892 = vsel %vm266, %v875, %v891
  %v893 = vsel %vm268, %v879, %v892
  %v896 = vsel %vm271, %v886, -inf
  %897 = vmax.xlane.f32.xlu0 %v896
  %v898 = vpop.xlane.xlu0 %897
  %v899 = vsel %vm271, %v893, -inf
  %900 = vmax.xlane.f32.xlu0 %v899
  %v901 = vpop.xlane.xlu0 %900
  %v904 = vlaneseq
  %v905 = vshrl.u32 %v904, 7
  %v906 = vsub.s32 0, %v905
  %v907 = vrot.slane %v898, %v906
  %v908 = vlaneseq
  %v909 = vshrl.u32 %v908, 7
  %v910 = vsub.s32 1, %v909
  %v911 = vrot.slane %v898, %v910
  %v912 = vlaneseq
  %v913 = vshrl.u32 %v912, 7
  %v914 = vsub.s32 2, %v913
  %v915 = vrot.slane %v898, %v914
  %v916 = vlaneseq
  %v917 = vshrl.u32 %v916, 7
  %v918 = vsub.s32 3, %v917
  %v919 = vrot.slane %v898, %v918
  %v920 = vlaneseq
  %v921 = vshrl.u32 %v920, 7
  %v922 = vsub.s32 4, %v921
  %v923 = vrot.slane %v898, %v922
  %v924 = vlaneseq
  %v925 = vshrl.u32 %v924, 7
  %v926 = vsub.s32 5, %v925
  %v927 = vrot.slane %v898, %v926
  %v928 = vlaneseq
  %v929 = vshrl.u32 %v928, 7
  %v930 = vsub.s32 6, %v929
  %v931 = vrot.slane %v898, %v930
  %v932 = vlaneseq
  %v933 = vshrl.u32 %v932, 7
  %v934 = vsub.s32 7, %v933
  %v935 = vrot.slane %v898, %v934
  %v936 = vlaneseq
  %v937 = vshrl.u32 %v936, 7
  %v938 = vsub.s32 0, %v937
  %v939 = vrot.slane %v901, %v938
  %v940 = vlaneseq
  %v941 = vshrl.u32 %v940, 7
  %v942 = vsub.s32 1, %v941
  %v943 = vrot.slane %v901, %v942
  %v944 = vlaneseq
  %v945 = vshrl.u32 %v944, 7
  %v946 = vsub.s32 2, %v945
  %v947 = vrot.slane %v901, %v946
  %v948 = vlaneseq
  %v949 = vshrl.u32 %v948, 7
  %v950 = vsub.s32 3, %v949
  %v951 = vrot.slane %v901, %v950
  %v952 = vlaneseq
  %v953 = vshrl.u32 %v952, 7
  %v954 = vsub.s32 4, %v953
  %v955 = vrot.slane %v901, %v954
  %v956 = vlaneseq
  %v957 = vshrl.u32 %v956, 7
  %v958 = vsub.s32 5, %v957
  %v959 = vrot.slane %v901, %v958
  %v960 = vlaneseq
  %v961 = vshrl.u32 %v960, 7
  %v962 = vsub.s32 6, %v961
  %v963 = vrot.slane %v901, %v962
  %v964 = vlaneseq
  %v965 = vshrl.u32 %v964, 7
  %v966 = vsub.s32 7, %v965
  %v967 = vrot.slane %v901, %v966
  %v984 = vsub.f32 %v769, %v907
  %v985 = vsub.f32 %v771, %v911
  %v986 = vsub.f32 %v773, %v915
  %v987 = vsub.f32 %v775, %v919
  %v988 = vsub.f32 %v777, %v923
  %v989 = vsub.f32 %v779, %v927
  %v990 = vsub.f32 %v781, %v931
  %v991 = vsub.f32 %v783, %v935
  %v992 = vsub.f32 %v785, %v939
  %v993 = vsub.f32 %v787, %v943
  %v994 = vsub.f32 %v789, %v947
  %v995 = vsub.f32 %v791, %v951
  %v996 = vsub.f32 %v793, %v955
  %v997 = vsub.f32 %v795, %v959
  %v998 = vsub.f32 %v797, %v963
  %v999 = vsub.f32 %v799, %v967
  %v1000 = vmul.f32 %v984, 1.442695
  %v1001 = vpow.pop %v1000
  %v1002 = vmul.f32 %v985, 1.442695
  %v1003 = vpow.pop %v1002
  %v1004 = vmul.f32 %v986, 1.442695
  %v1005 = vpow.pop %v1004
  %v1006 = vmul.f32 %v987, 1.442695
  %v1007 = vpow.pop %v1006
  %v1008 = vmul.f32 %v988, 1.442695
  %v1009 = vpow.pop %v1008
  %v1010 = vmul.f32 %v989, 1.442695
  %v1011 = vpow.pop %v1010
  %v1012 = vmul.f32 %v990, 1.442695
  %v1013 = vpow.pop %v1012
  %v1014 = vmul.f32 %v991, 1.442695
  %v1015 = vpow.pop %v1014
  %v1016 = vmul.f32 %v992, 1.442695
  %v1017 = vpow.pop %v1016
  %v1018 = vmul.f32 %v993, 1.442695
  %v1019 = vpow.pop %v1018
  %v1020 = vmul.f32 %v994, 1.442695
  %v1021 = vpow.pop %v1020
  %v1022 = vmul.f32 %v995, 1.442695
  %v1023 = vpow.pop %v1022
  %v1024 = vmul.f32 %v996, 1.442695
  %v1025 = vpow.pop %v1024
  %v1026 = vmul.f32 %v997, 1.442695
  %v1027 = vpow.pop %v1026
  %v1028 = vmul.f32 %v998, 1.442695
  %v1029 = vpow.pop %v1028
  %v1030 = vmul.f32 %v999, 1.442695
  %v1031 = vpow.pop %v1030
  %1048 = vset.pattern.permute.xlu0 0
  %1049 = vperm.xlu0 %1048, %v1001
  %v1050 = vpop.permute.xlu0 %1049
  %1051 = vset.pattern.permute.xlu0 0
  %1052 = vperm.xlu0 %1051, %v1003
  %v1053 = vpop.permute.xlu0 %1052
  %1054 = vset.pattern.permute.xlu0 0
  %1055 = vperm.xlu0 %1054, %v1005
  %v1056 = vpop.permute.xlu0 %1055
  %1057 = vset.pattern.permute.xlu0 0
  %1058 = vperm.xlu0 %1057, %v1007
  %v1059 = vpop.permute.xlu0 %1058
  %1060 = vset.pattern.permute.xlu0 0
  %1061 = vperm.xlu0 %1060, %v1009
  %v1062 = vpop.permute.xlu0 %1061
  %1063 = vset.pattern.permute.xlu0 0
  %1064 = vperm.xlu0 %1063, %v1011
  %v1065 = vpop.permute.xlu0 %1064
  %1066 = vset.pattern.permute.xlu0 0
  %1067 = vperm.xlu0 %1066, %v1013
  %v1068 = vpop.permute.xlu0 %1067
  %1069 = vset.pattern.permute.xlu0 0
  %1070 = vperm.xlu0 %1069, %v1015
  %v1071 = vpop.permute.xlu0 %1070
  %1072 = vset.pattern.permute.xlu0 0
  %1073 = vperm.xlu0 %1072, %v1017
  %v1074 = vpop.permute.xlu0 %1073
  %1075 = vset.pattern.permute.xlu0 0
  %1076 = vperm.xlu0 %1075, %v1019
  %v1077 = vpop.permute.xlu0 %1076
  %1078 = vset.pattern.permute.xlu0 0
  %1079 = vperm.xlu0 %1078, %v1021
  %v1080 = vpop.permute.xlu0 %1079
  %1081 = vset.pattern.permute.xlu0 0
  %1082 = vperm.xlu0 %1081, %v1023
  %v1083 = vpop.permute.xlu0 %1082
  %1084 = vset.pattern.permute.xlu0 0
  %1085 = vperm.xlu0 %1084, %v1025
  %v1086 = vpop.permute.xlu0 %1085
  %1087 = vset.pattern.permute.xlu0 0
  %1088 = vperm.xlu0 %1087, %v1027
  %v1089 = vpop.permute.xlu0 %1088
  %1090 = vset.pattern.permute.xlu0 0
  %1091 = vperm.xlu0 %1090, %v1029
  %v1092 = vpop.permute.xlu0 %1091
  %1093 = vset.pattern.permute.xlu0 0
  %1094 = vperm.xlu0 %1093, %v1031
  %v1095 = vpop.permute.xlu0 %1094
  %v1096 = vlaneseq
  %v1097 = vshrl.u32 %v1096, 7
  %v1098 = vsub.s32 %v223, %v1097
  %v1099 = vrot.slane %v1050, %v1098
  %v1100 = vlaneseq
  %v1101 = vshrl.u32 %v1100, 7
  %v1102 = vsub.s32 %v223, %v1101
  %v1103 = vrot.slane %v1053, %v1102
  %v1104 = vlaneseq
  %v1105 = vshrl.u32 %v1104, 7
  %v1106 = vsub.s32 %v223, %v1105
  %v1107 = vrot.slane %v1056, %v1106
  %v1108 = vlaneseq
  %v1109 = vshrl.u32 %v1108, 7
  %v1110 = vsub.s32 %v223, %v1109
  %v1111 = vrot.slane %v1059, %v1110
  %v1112 = vlaneseq
  %v1113 = vshrl.u32 %v1112, 7
  %v1114 = vsub.s32 %v223, %v1113
  %v1115 = vrot.slane %v1062, %v1114
  %v1116 = vlaneseq
  %v1117 = vshrl.u32 %v1116, 7
  %v1118 = vsub.s32 %v223, %v1117
  %v1119 = vrot.slane %v1065, %v1118
  %v1120 = vlaneseq
  %v1121 = vshrl.u32 %v1120, 7
  %v1122 = vsub.s32 %v223, %v1121
  %v1123 = vrot.slane %v1068, %v1122
  %v1124 = vlaneseq
  %v1125 = vshrl.u32 %v1124, 7
  %v1126 = vsub.s32 %v223, %v1125
  %v1127 = vrot.slane %v1071, %v1126
  %v1128 = vlaneseq
  %v1129 = vshrl.u32 %v1128, 7
  %v1130 = vsub.s32 %v223, %v1129
  %v1131 = vrot.slane %v1074, %v1130
  %v1132 = vlaneseq
  %v1133 = vshrl.u32 %v1132, 7
  %v1134 = vsub.s32 %v223, %v1133
  %v1135 = vrot.slane %v1077, %v1134
  %v1136 = vlaneseq
  %v1137 = vshrl.u32 %v1136, 7
  %v1138 = vsub.s32 %v223, %v1137
  %v1139 = vrot.slane %v1080, %v1138
  %v1140 = vlaneseq
  %v1141 = vshrl.u32 %v1140, 7
  %v1142 = vsub.s32 %v223, %v1141
  %v1143 = vrot.slane %v1083, %v1142
  %v1144 = vlaneseq
  %v1145 = vshrl.u32 %v1144, 7
  %v1146 = vsub.s32 %v223, %v1145
  %v1147 = vrot.slane %v1086, %v1146
  %v1148 = vlaneseq
  %v1149 = vshrl.u32 %v1148, 7
  %v1150 = vsub.s32 %v223, %v1149
  %v1151 = vrot.slane %v1089, %v1150
  %v1152 = vlaneseq
  %v1153 = vshrl.u32 %v1152, 7
  %v1154 = vsub.s32 %v223, %v1153
  %v1155 = vrot.slane %v1092, %v1154
  %v1156 = vlaneseq
  %v1157 = vshrl.u32 %v1156, 7
  %v1158 = vsub.s32 %v223, %v1157
  %v1159 = vrot.slane %v1095, %v1158
  %v1160 = vsel %vm256, %v1103, %v1099
  %v1161 = vsel %vm258, %v1107, %v1160
  %v1162 = vsel %vm260, %v1111, %v1161
  %v1163 = vsel %vm262, %v1115, %v1162
  %v1164 = vsel %vm264, %v1119, %v1163
  %v1165 = vsel %vm266, %v1123, %v1164
  %v1166 = vsel %vm268, %v1127, %v1165
  %v1167 = vsel %vm256, %v1135, %v1131
  %v1168 = vsel %vm258, %v1139, %v1167
  %v1169 = vsel %vm260, %v1143, %v1168
  %v1170 = vsel %vm262, %v1147, %v1169
  %v1171 = vsel %vm264, %v1151, %v1170
  %v1172 = vsel %vm266, %v1155, %v1171
  %v1173 = vsel %vm268, %v1159, %v1172
  %v1176 = vsel %vm271, %v1166, 0.0
  %1177 = vadd.xlane.f32.xlu0 %v1176
  %v1178 = vpop.xlane.xlu0 %1177
  %v1179 = vsel %vm271, %v1173, 0.0
  %1180 = vadd.xlane.f32.xlu0 %v1179
  %v1181 = vpop.xlane.xlu0 %1180
  %v1182 = vrcp.pop %v1178
  %v1183 = vrcp.pop %v1181
  %v1186 = vlaneseq
  %v1187 = vshrl.u32 %v1186, 7
  %v1188 = vsub.s32 0, %v1187
  %v1189 = vrot.slane %v1182, %v1188
  %v1190 = vlaneseq
  %v1191 = vshrl.u32 %v1190, 7
  %v1192 = vsub.s32 1, %v1191
  %v1193 = vrot.slane %v1182, %v1192
  %v1194 = vlaneseq
  %v1195 = vshrl.u32 %v1194, 7
  %v1196 = vsub.s32 2, %v1195
  %v1197 = vrot.slane %v1182, %v1196
  %v1198 = vlaneseq
  %v1199 = vshrl.u32 %v1198, 7
  %v1200 = vsub.s32 3, %v1199
  %v1201 = vrot.slane %v1182, %v1200
  %v1202 = vlaneseq
  %v1203 = vshrl.u32 %v1202, 7
  %v1204 = vsub.s32 4, %v1203
  %v1205 = vrot.slane %v1182, %v1204
  %v1206 = vlaneseq
  %v1207 = vshrl.u32 %v1206, 7
  %v1208 = vsub.s32 5, %v1207
  %v1209 = vrot.slane %v1182, %v1208
  %v1210 = vlaneseq
  %v1211 = vshrl.u32 %v1210, 7
  %v1212 = vsub.s32 6, %v1211
  %v1213 = vrot.slane %v1182, %v1212
  %v1214 = vlaneseq
  %v1215 = vshrl.u32 %v1214, 7
  %v1216 = vsub.s32 7, %v1215
  %v1217 = vrot.slane %v1182, %v1216
  %v1218 = vlaneseq
  %v1219 = vshrl.u32 %v1218, 7
  %v1220 = vsub.s32 0, %v1219
  %v1221 = vrot.slane %v1183, %v1220
  %v1222 = vlaneseq
  %v1223 = vshrl.u32 %v1222, 7
  %v1224 = vsub.s32 1, %v1223
  %v1225 = vrot.slane %v1183, %v1224
  %v1226 = vlaneseq
  %v1227 = vshrl.u32 %v1226, 7
  %v1228 = vsub.s32 2, %v1227
  %v1229 = vrot.slane %v1183, %v1228
  %v1230 = vlaneseq
  %v1231 = vshrl.u32 %v1230, 7
  %v1232 = vsub.s32 3, %v1231
  %v1233 = vrot.slane %v1183, %v1232
  %v1234 = vlaneseq
  %v1235 = vshrl.u32 %v1234, 7
  %v1236 = vsub.s32 4, %v1235
  %v1237 = vrot.slane %v1183, %v1236
  %v1238 = vlaneseq
  %v1239 = vshrl.u32 %v1238, 7
  %v1240 = vsub.s32 5, %v1239
  %v1241 = vrot.slane %v1183, %v1240
  %v1242 = vlaneseq
  %v1243 = vshrl.u32 %v1242, 7
  %v1244 = vsub.s32 6, %v1243
  %v1245 = vrot.slane %v1183, %v1244
  %v1246 = vlaneseq
  %v1247 = vshrl.u32 %v1246, 7
  %v1248 = vsub.s32 7, %v1247
  %v1249 = vrot.slane %v1183, %v1248
  %v1266 = vmul.f32 %v1001, %v1189
  %v1267 = vmul.f32 %v1003, %v1193
  %v1268 = vmul.f32 %v1005, %v1197
  %v1269 = vmul.f32 %v1007, %v1201
  %v1270 = vmul.f32 %v1009, %v1205
  %v1271 = vmul.f32 %v1011, %v1209
  %v1272 = vmul.f32 %v1013, %v1213
  %v1273 = vmul.f32 %v1015, %v1217
  %v1274 = vmul.f32 %v1017, %v1221
  %v1275 = vmul.f32 %v1019, %v1225
  %v1276 = vmul.f32 %v1021, %v1229
  %v1277 = vmul.f32 %v1023, %v1233
  %v1278 = vmul.f32 %v1025, %v1237
  %v1279 = vmul.f32 %v1027, %v1241
  %v1280 = vmul.f32 %v1029, %v1245
  %v1281 = vmul.f32 %v1031, %v1249
  %1283 = vset.pattern.permute.xlu0 0
  %1284 = vperm.xlu0 %1283, %v1266
  %v1285 = vpop.permute.xlu0 %1284
  %1288 = vset.pattern.permute.xlu0 0
  %1289 = vperm.xlu0 %1288, %v1267
  %v1290 = vpop.permute.xlu0 %1289
  %1293 = vset.pattern.permute.xlu0 0
  %1294 = vperm.xlu0 %1293, %v1268
  %v1295 = vpop.permute.xlu0 %1294
  %1298 = vset.pattern.permute.xlu0 0
  %1299 = vperm.xlu0 %1298, %v1269
  %v1300 = vpop.permute.xlu0 %1299
  %1303 = vset.pattern.permute.xlu0 0
  %1304 = vperm.xlu0 %1303, %v1270
  %v1305 = vpop.permute.xlu0 %1304
  %1308 = vset.pattern.permute.xlu0 0
  %1309 = vperm.xlu0 %1308, %v1271
  %v1310 = vpop.permute.xlu0 %1309
  %1313 = vset.pattern.permute.xlu0 0
  %1314 = vperm.xlu0 %1313, %v1272
  %v1315 = vpop.permute.xlu0 %1314
  %1318 = vset.pattern.permute.xlu0 0
  %1319 = vperm.xlu0 %1318, %v1273
  %v1320 = vpop.permute.xlu0 %1319
  %1323 = vset.pattern.permute.xlu0 0
  %1324 = vperm.xlu0 %1323, %v1274
  %v1325 = vpop.permute.xlu0 %1324
  %1328 = vset.pattern.permute.xlu0 0
  %1329 = vperm.xlu0 %1328, %v1275
  %v1330 = vpop.permute.xlu0 %1329
  %1333 = vset.pattern.permute.xlu0 0
  %1334 = vperm.xlu0 %1333, %v1276
  %v1335 = vpop.permute.xlu0 %1334
  %1338 = vset.pattern.permute.xlu0 0
  %1339 = vperm.xlu0 %1338, %v1277
  %v1340 = vpop.permute.xlu0 %1339
  %1343 = vset.pattern.permute.xlu0 0
  %1344 = vperm.xlu0 %1343, %v1278
  %v1345 = vpop.permute.xlu0 %1344
  %1348 = vset.pattern.permute.xlu0 0
  %1349 = vperm.xlu0 %1348, %v1279
  %v1350 = vpop.permute.xlu0 %1349
  %1353 = vset.pattern.permute.xlu0 0
  %1354 = vperm.xlu0 %1353, %v1280
  %v1355 = vpop.permute.xlu0 %1354
  %1358 = vset.pattern.permute.xlu0 0
  %1359 = vperm.xlu0 %1358, %v1281
  %v1360 = vpop.permute.xlu0 %1359
  %v1362 = vmul.f32 %v668, %v1285
  %v1363 = vmul.f32 %v673, %v1290
  %v1364 = vmul.f32 %v678, %v1295
  %v1365 = vmul.f32 %v683, %v1300
  %v1366 = vmul.f32 %v688, %v1305
  %v1367 = vmul.f32 %v693, %v1310
  %v1368 = vmul.f32 %v698, %v1315
  %v1369 = vmul.f32 %v703, %v1320
  %v1370 = vmul.f32 %v708, %v1325
  %v1371 = vmul.f32 %v713, %v1330
  %v1372 = vmul.f32 %v718, %v1335
  %v1373 = vmul.f32 %v723, %v1340
  %v1374 = vmul.f32 %v728, %v1345
  %v1375 = vmul.f32 %v733, %v1350
  %v1376 = vmul.f32 %v738, %v1355
  %v1377 = vmul.f32 %v743, %v1360
  %v1378 = vrot.slane %v1362, 4
  %v1379 = vadd.f32 %v1362, %v1378
  %v1380 = vrot.slane %v1379, 2
  %v1381 = vadd.f32 %v1379, %v1380
  %v1382 = vrot.slane %v1381, 1
  %v1383 = vadd.f32 %v1381, %v1382
  %v1384 = vrot.slane %v1363, 4
  %v1385 = vadd.f32 %v1363, %v1384
  %v1386 = vrot.slane %v1385, 2
  %v1387 = vadd.f32 %v1385, %v1386
  %v1388 = vrot.slane %v1387, 1
  %v1389 = vadd.f32 %v1387, %v1388
  %v1390 = vrot.slane %v1364, 4
  %v1391 = vadd.f32 %v1364, %v1390
  %v1392 = vrot.slane %v1391, 2
  %v1393 = vadd.f32 %v1391, %v1392
  %v1394 = vrot.slane %v1393, 1
  %v1395 = vadd.f32 %v1393, %v1394
  %v1396 = vrot.slane %v1365, 4
  %v1397 = vadd.f32 %v1365, %v1396
  %v1398 = vrot.slane %v1397, 2
  %v1399 = vadd.f32 %v1397, %v1398
  %v1400 = vrot.slane %v1399, 1
  %v1401 = vadd.f32 %v1399, %v1400
  %v1402 = vrot.slane %v1366, 4
  %v1403 = vadd.f32 %v1366, %v1402
  %v1404 = vrot.slane %v1403, 2
  %v1405 = vadd.f32 %v1403, %v1404
  %v1406 = vrot.slane %v1405, 1
  %v1407 = vadd.f32 %v1405, %v1406
  %v1408 = vrot.slane %v1367, 4
  %v1409 = vadd.f32 %v1367, %v1408
  %v1410 = vrot.slane %v1409, 2
  %v1411 = vadd.f32 %v1409, %v1410
  %v1412 = vrot.slane %v1411, 1
  %v1413 = vadd.f32 %v1411, %v1412
  %v1414 = vrot.slane %v1368, 4
  %v1415 = vadd.f32 %v1368, %v1414
  %v1416 = vrot.slane %v1415, 2
  %v1417 = vadd.f32 %v1415, %v1416
  %v1418 = vrot.slane %v1417, 1
  %v1419 = vadd.f32 %v1417, %v1418
  %v1420 = vrot.slane %v1369, 4
  %v1421 = vadd.f32 %v1369, %v1420
  %v1422 = vrot.slane %v1421, 2
  %v1423 = vadd.f32 %v1421, %v1422
  %v1424 = vrot.slane %v1423, 1
  %v1425 = vadd.f32 %v1423, %v1424
  %v1426 = vrot.slane %v1370, 4
  %v1427 = vadd.f32 %v1370, %v1426
  %v1428 = vrot.slane %v1427, 2
  %v1429 = vadd.f32 %v1427, %v1428
  %v1430 = vrot.slane %v1429, 1
  %v1431 = vadd.f32 %v1429, %v1430
  %v1432 = vrot.slane %v1371, 4
  %v1433 = vadd.f32 %v1371, %v1432
  %v1434 = vrot.slane %v1433, 2
  %v1435 = vadd.f32 %v1433, %v1434
  %v1436 = vrot.slane %v1435, 1
  %v1437 = vadd.f32 %v1435, %v1436
  %v1438 = vrot.slane %v1372, 4
  %v1439 = vadd.f32 %v1372, %v1438
  %v1440 = vrot.slane %v1439, 2
  %v1441 = vadd.f32 %v1439, %v1440
  %v1442 = vrot.slane %v1441, 1
  %v1443 = vadd.f32 %v1441, %v1442
  %v1444 = vrot.slane %v1373, 4
  %v1445 = vadd.f32 %v1373, %v1444
  %v1446 = vrot.slane %v1445, 2
  %v1447 = vadd.f32 %v1445, %v1446
  %v1448 = vrot.slane %v1447, 1
  %v1449 = vadd.f32 %v1447, %v1448
  %v1450 = vrot.slane %v1374, 4
  %v1451 = vadd.f32 %v1374, %v1450
  %v1452 = vrot.slane %v1451, 2
  %v1453 = vadd.f32 %v1451, %v1452
  %v1454 = vrot.slane %v1453, 1
  %v1455 = vadd.f32 %v1453, %v1454
  %v1456 = vrot.slane %v1375, 4
  %v1457 = vadd.f32 %v1375, %v1456
  %v1458 = vrot.slane %v1457, 2
  %v1459 = vadd.f32 %v1457, %v1458
  %v1460 = vrot.slane %v1459, 1
  %v1461 = vadd.f32 %v1459, %v1460
  %v1462 = vrot.slane %v1376, 4
  %v1463 = vadd.f32 %v1376, %v1462
  %v1464 = vrot.slane %v1463, 2
  %v1465 = vadd.f32 %v1463, %v1464
  %v1466 = vrot.slane %v1465, 1
  %v1467 = vadd.f32 %v1465, %v1466
  %v1468 = vrot.slane %v1377, 4
  %v1469 = vadd.f32 %v1377, %v1468
  %v1470 = vrot.slane %v1469, 2
  %v1471 = vadd.f32 %v1469, %v1470
  %v1472 = vrot.slane %v1471, 1
  %v1473 = vadd.f32 %v1471, %v1472
  %v1482 = vsel %vm256, %v524, %v518
  %v1483 = vsel %vm258, %v530, %v1482
  %v1484 = vsel %vm260, %v536, %v1483
  %v1485 = vsel %vm262, %v542, %v1484
  %v1486 = vsel %vm264, %v548, %v1485
  %v1487 = vsel %vm266, %v554, %v1486
  %v1488 = vsel %vm268, %v560, %v1487
  %v1498 = vsel %vm256, %v1389, %v1383
  %v1499 = vsel %vm258, %v1395, %v1498
  %v1500 = vsel %vm260, %v1401, %v1499
  %v1501 = vsel %vm262, %v1407, %v1500
  %v1502 = vsel %vm264, %v1413, %v1501
  %v1503 = vsel %vm266, %v1419, %v1502
  %v1504 = vsel %vm268, %v1425, %v1503
  %v1514 = vsel %vm256, %v1437, %v1431
  %v1515 = vsel %vm258, %v1443, %v1514
  %v1516 = vsel %vm260, %v1449, %v1515
  %v1517 = vsel %vm262, %v1455, %v1516
  %v1518 = vsel %vm264, %v1461, %v1517
  %v1519 = vsel %vm266, %v1467, %v1518
  %v1520 = vsel %vm268, %v1473, %v1519
  %v1522 = vld [vmem:[%s8] sm:$0xff]
  %v1523 = vld [vmem:[%s8 + $0x8] sm:$0xff]
  %v1524 = vld [vmem:[%s8 + $0x10] sm:$0xff]
  %v1525 = vld [vmem:[%s8 + $0x18] sm:$0xff]
  %v1526 = vld [vmem:[%s8 + $0x20] sm:$0xff]
  %v1527 = vld [vmem:[%s8 + $0x28] sm:$0xff]
  %v1528 = vld [vmem:[%s8 + $0x30] sm:$0xff]
  %v1529 = vld [vmem:[%s8 + $0x38] sm:$0xff]
  %v1530 = vld [vmem:[%s8 + $0x40] sm:$0xff]
  %v1531 = vld [vmem:[%s8 + $0x48] sm:$0xff]
  %v1532 = vld [vmem:[%s8 + $0x50] sm:$0xff]
  %v1533 = vld [vmem:[%s8 + $0x58] sm:$0xff]
  %v1534 = vld [vmem:[%s8 + $0x60] sm:$0xff]
  %v1535 = vld [vmem:[%s8 + $0x68] sm:$0xff]
  %v1536 = vld [vmem:[%s8 + $0x70] sm:$0xff]
  %v1537 = vld [vmem:[%s8 + $0x78] sm:$0xff]
  %v1538 = vld [vmem:[%s8 + $0x80] sm:$0xff]
  %v1539 = vld [vmem:[%s8 + $0x88] sm:$0xff]
  %v1540 = vld [vmem:[%s8 + $0x90] sm:$0xff]
  %v1541 = vld [vmem:[%s8 + $0x98] sm:$0xff]
  %v1542 = vld [vmem:[%s8 + $0xa0] sm:$0xff]
  %v1543 = vld [vmem:[%s8 + $0xa8] sm:$0xff]
  %v1544 = vld [vmem:[%s8 + $0xb0] sm:$0xff]
  %v1545 = vld [vmem:[%s8 + $0xb8] sm:$0xff]
  %v1546 = vld [vmem:[%s8 + $0xc0] sm:$0xff]
  %v1547 = vld [vmem:[%s8 + $0xc8] sm:$0xff]
  %v1548 = vld [vmem:[%s8 + $0xd0] sm:$0xff]
  %v1549 = vld [vmem:[%s8 + $0xd8] sm:$0xff]
  %v1550 = vld [vmem:[%s8 + $0xe0] sm:$0xff]
  %v1551 = vld [vmem:[%s8 + $0xe8] sm:$0xff]
  %v1552 = vld [vmem:[%s8 + $0xf0] sm:$0xff]
  %v1553 = vld [vmem:[%s8 + $0xf8] sm:$0xff]
  %v1554 = vld [vmem:[%s8 + $0x100] sm:$0xff]
  %v1555 = vld [vmem:[%s8 + $0x108] sm:$0xff]
  %v1556 = vld [vmem:[%s8 + $0x110] sm:$0xff]
  %v1557 = vld [vmem:[%s8 + $0x118] sm:$0xff]
  %v1558 = vld [vmem:[%s8 + $0x120] sm:$0xff]
  %v1559 = vld [vmem:[%s8 + $0x128] sm:$0xff]
  %v1560 = vld [vmem:[%s8 + $0x130] sm:$0xff]
  %v1561 = vld [vmem:[%s8 + $0x138] sm:$0xff]
  %v1562 = vld [vmem:[%s8 + $0x140] sm:$0xff]
  %v1563 = vld [vmem:[%s8 + $0x148] sm:$0xff]
  %v1564 = vld [vmem:[%s8 + $0x150] sm:$0xff]
  %v1565 = vld [vmem:[%s8 + $0x158] sm:$0xff]
  %v1566 = vld [vmem:[%s8 + $0x160] sm:$0xff]
  %v1567 = vld [vmem:[%s8 + $0x168] sm:$0xff]
  %v1568 = vld [vmem:[%s8 + $0x170] sm:$0xff]
  %v1569 = vld [vmem:[%s8 + $0x178] sm:$0xff]
  %v1570 = vld [vmem:[%s8 + $0x180] sm:$0xff]
  %v1571 = vld [vmem:[%s8 + $0x188] sm:$0xff]
  %v1572 = vld [vmem:[%s8 + $0x190] sm:$0xff]
  %v1573 = vld [vmem:[%s8 + $0x198] sm:$0xff]
  %v1574 = vld [vmem:[%s8 + $0x1a0] sm:$0xff]
  %v1575 = vld [vmem:[%s8 + $0x1a8] sm:$0xff]
  %v1576 = vld [vmem:[%s8 + $0x1b0] sm:$0xff]
  %v1577 = vld [vmem:[%s8 + $0x1b8] sm:$0xff]
  %v1578 = vld [vmem:[%s8 + $0x1c0] sm:$0xff]
  %v1579 = vld [vmem:[%s8 + $0x1c8] sm:$0xff]
  %v1580 = vld [vmem:[%s8 + $0x1d0] sm:$0xff]
  %v1581 = vld [vmem:[%s8 + $0x1d8] sm:$0xff]
  %v1582 = vld [vmem:[%s8 + $0x1e0] sm:$0xff]
  %v1583 = vld [vmem:[%s8 + $0x1e8] sm:$0xff]
  %v1584 = vld [vmem:[%s8 + $0x1f0] sm:$0xff]
  %v1585 = vld [vmem:[%s8 + $0x1f8] sm:$0xff]
  %v1586 = vld [vmem:[%s8 + $0x200] sm:$0xff]
  %v1587 = vld [vmem:[%s8 + $0x208] sm:$0xff]
  %v1588 = vld [vmem:[%s8 + $0x210] sm:$0xff]
  %v1589 = vld [vmem:[%s8 + $0x218] sm:$0xff]
  %v1590 = vld [vmem:[%s8 + $0x220] sm:$0xff]
  %v1591 = vld [vmem:[%s8 + $0x228] sm:$0xff]
  %v1592 = vld [vmem:[%s8 + $0x230] sm:$0xff]
  %v1593 = vld [vmem:[%s8 + $0x238] sm:$0xff]
  %v1594 = vld [vmem:[%s8 + $0x240] sm:$0xff]
  %v1595 = vld [vmem:[%s8 + $0x248] sm:$0xff]
  %v1596 = vld [vmem:[%s8 + $0x250] sm:$0xff]
  %v1597 = vld [vmem:[%s8 + $0x258] sm:$0xff]
  %v1598 = vld [vmem:[%s8 + $0x260] sm:$0xff]
  %v1599 = vld [vmem:[%s8 + $0x268] sm:$0xff]
  %v1600 = vld [vmem:[%s8 + $0x270] sm:$0xff]
  %v1601 = vld [vmem:[%s8 + $0x278] sm:$0xff]
  %v1602 = vld [vmem:[%s8 + $0x280] sm:$0xff]
  %v1603 = vld [vmem:[%s8 + $0x288] sm:$0xff]
  %v1604 = vld [vmem:[%s8 + $0x290] sm:$0xff]
  %v1605 = vld [vmem:[%s8 + $0x298] sm:$0xff]
  %v1606 = vld [vmem:[%s8 + $0x2a0] sm:$0xff]
  %v1607 = vld [vmem:[%s8 + $0x2a8] sm:$0xff]
  %v1608 = vld [vmem:[%s8 + $0x2b0] sm:$0xff]
  %v1609 = vld [vmem:[%s8 + $0x2b8] sm:$0xff]
  %v1610 = vld [vmem:[%s8 + $0x2c0] sm:$0xff]
  %v1611 = vld [vmem:[%s8 + $0x2c8] sm:$0xff]
  %v1612 = vld [vmem:[%s8 + $0x2d0] sm:$0xff]
  %v1613 = vld [vmem:[%s8 + $0x2d8] sm:$0xff]
  %v1614 = vld [vmem:[%s8 + $0x2e0] sm:$0xff]
  %v1615 = vld [vmem:[%s8 + $0x2e8] sm:$0xff]
  %v1616 = vld [vmem:[%s8 + $0x2f0] sm:$0xff]
  %v1617 = vld [vmem:[%s8 + $0x2f8] sm:$0xff]
  %v1618 = vld [vmem:[%s9] sm:$0x3]
  %v1620 = vlaneseq
  %v1621 = vshrl.u32 %v1620, 7
  %v1622 = vsub.s32 0, %v1621
  %v1623 = vrot.slane %v1618, %v1622
  %v1624 = vlaneseq
  %v1625 = vshrl.u32 %v1624, 7
  %v1626 = vsub.s32 1, %v1625
  %v1627 = vrot.slane %v1618, %v1626
  %1630 = vmatprep.subr.mxu0 %v1523
  %1631 = vmatpush1.msra.mxu0 %v1522
  %1632 = vmatprep.subr.mxu0 %v1525
  %1633 = vmatpush1.msra.mxu0 %v1524
  %1634 = vmatprep.subr.mxu0 %v1527
  %1635 = vmatpush1.msra.mxu0 %v1526
  %1636 = vmatprep.subr.mxu0 %v1529
  %1637 = vmatpush1.msra.mxu0 %v1528
  %1638 = vmatprep.subr.mxu0 %v1531
  %1639 = vmatpush1.msra.mxu0 %v1530
  %1640 = vmatprep.subr.mxu0 %v1533
  %1641 = vmatpush1.msra.mxu0 %v1532
  %1642 = vmatprep.subr.mxu0 %v1535
  %1643 = vmatpush1.msra.mxu0 %v1534
  %1644 = vmatprep.subr.mxu0 %v1537
  %1645 = vmatpush1.msra.mxu0 %v1536
  %1646 = vmatprep.subr.mxu0 %v1539
  %1647 = vmatpush1.msra.mxu0 %v1538
  %1648 = vmatprep.subr.mxu0 %v1541
  %1649 = vmatpush1.msra.mxu0 %v1540
  %1650 = vmatprep.subr.mxu0 %v1543
  %1651 = vmatpush1.msra.mxu0 %v1542
  %1652 = vmatprep.subr.mxu0 %v1545
  %1653 = vmatpush1.msra.mxu0 %v1544
  %1654 = vmatprep.subr.mxu0 %v1547
  %1655 = vmatpush1.msra.mxu0 %v1546
  %1656 = vmatprep.subr.mxu0 %v1549
  %1657 = vmatpush1.msra.mxu0 %v1548
  %1658 = vmatprep.subr.mxu0 %v1551
  %1659 = vmatpush1.msra.mxu0 %v1550
  %1660 = vmatprep.subr.mxu0 %v1553
  %1661 = vmatpush1.msra.mxu0 %v1552
  %1662 = vmatprep.subr.mxu0 %v1555
  %1663 = vmatpush1.msra.mxu0 %v1554
  %1664 = vmatprep.subr.mxu0 %v1557
  %1665 = vmatpush1.msra.mxu0 %v1556
  %1666 = vmatprep.subr.mxu0 %v1559
  %1667 = vmatpush1.msra.mxu0 %v1558
  %1668 = vmatprep.subr.mxu0 %v1561
  %1669 = vmatpush1.msra.mxu0 %v1560
  %1670 = vmatprep.subr.mxu0 %v1563
  %1671 = vmatpush1.msra.mxu0 %v1562
  %1672 = vmatprep.subr.mxu0 %v1565
  %1673 = vmatpush1.msra.mxu0 %v1564
  %1674 = vmatprep.subr.mxu0 %v1567
  %1675 = vmatpush1.msra.mxu0 %v1566
  %1676 = vmatprep.subr.mxu0 %v1569
  %1677 = vmatpush1.msra.mxu0 %v1568
  %1678 = vmatprep.subr.mxu0 %v1571
  %1679 = vmatpush1.msra.mxu0 %v1570
  %1680 = vmatprep.subr.mxu0 %v1573
  %1681 = vmatpush1.msra.mxu0 %v1572
  %1682 = vmatprep.subr.mxu0 %v1575
  %1683 = vmatpush1.msra.mxu0 %v1574
  %1684 = vmatprep.subr.mxu0 %v1577
  %1685 = vmatpush1.msra.mxu0 %v1576
  %1686 = vmatprep.subr.mxu0 %v1579
  %1687 = vmatpush1.msra.mxu0 %v1578
  %1688 = vmatprep.subr.mxu0 %v1581
  %1689 = vmatpush1.msra.mxu0 %v1580
  %1690 = vmatprep.subr.mxu0 %v1583
  %1691 = vmatpush1.msra.mxu0 %v1582
  %1692 = vmatprep.subr.mxu0 %v1585
  %1693 = vmatpush1.msra.mxu0 %v1584
  %1694 = vmatprep.mubr.f32.mxu0 %v1504
  %1695 = vmatmul.mubr.f32.gmra.mrb[0].mxu0 %v1488
  %v1696 = vpop.f32.mrb[0].mxu0
  %v1697 = vadd.f32 %v1623, %v1696
  %v1698 = vpop.f32.mrb[0].mxu0
  %v1699 = vadd.f32 %v1627, %v1698
  %1700 = vdwg.mxu0
  %1701 = vmatprep.subr.mxu0 %v1587
  %1702 = vmatpush1.msra.mxu0 %v1586
  %1703 = vmatprep.subr.mxu0 %v1589
  %1704 = vmatpush1.msra.mxu0 %v1588
  %1705 = vmatprep.subr.mxu0 %v1591
  %1706 = vmatpush1.msra.mxu0 %v1590
  %1707 = vmatprep.subr.mxu0 %v1593
  %1708 = vmatpush1.msra.mxu0 %v1592
  %1709 = vmatprep.subr.mxu0 %v1595
  %1710 = vmatpush1.msra.mxu0 %v1594
  %1711 = vmatprep.subr.mxu0 %v1597
  %1712 = vmatpush1.msra.mxu0 %v1596
  %1713 = vmatprep.subr.mxu0 %v1599
  %1714 = vmatpush1.msra.mxu0 %v1598
  %1715 = vmatprep.subr.mxu0 %v1601
  %1716 = vmatpush1.msra.mxu0 %v1600
  %1717 = vmatprep.subr.mxu0 %v1603
  %1718 = vmatpush1.msra.mxu0 %v1602
  %1719 = vmatprep.subr.mxu0 %v1605
  %1720 = vmatpush1.msra.mxu0 %v1604
  %1721 = vmatprep.subr.mxu0 %v1607
  %1722 = vmatpush1.msra.mxu0 %v1606
  %1723 = vmatprep.subr.mxu0 %v1609
  %1724 = vmatpush1.msra.mxu0 %v1608
  %1725 = vmatprep.subr.mxu0 %v1611
  %1726 = vmatpush1.msra.mxu0 %v1610
  %1727 = vmatprep.subr.mxu0 %v1613
  %1728 = vmatpush1.msra.mxu0 %v1612
  %1729 = vmatprep.subr.mxu0 %v1615
  %1730 = vmatpush1.msra.mxu0 %v1614
  %1731 = vmatprep.subr.mxu0 %v1617
  %1732 = vmatpush1.msra.mxu0 %v1616
  %1733 = vmatprep.subr.mxu0 0.0
  %1734 = vmatpush1.msra.mxu0 0.0
  %1735 = vmatprep.subr.mxu0 0.0
  %1736 = vmatpush1.msra.mxu0 0.0
  %1737 = vmatprep.subr.mxu0 0.0
  %1738 = vmatpush1.msra.mxu0 0.0
  %1739 = vmatprep.subr.mxu0 0.0
  %1740 = vmatpush1.msra.mxu0 0.0
  %1741 = vmatprep.subr.mxu0 0.0
  %1742 = vmatpush1.msra.mxu0 0.0
  %1743 = vmatprep.subr.mxu0 0.0
  %1744 = vmatpush1.msra.mxu0 0.0
  %1745 = vmatprep.subr.mxu0 0.0
  %1746 = vmatpush1.msra.mxu0 0.0
  %1747 = vmatprep.subr.mxu0 0.0
  %1748 = vmatpush1.msra.mxu0 0.0
  %1749 = vmatprep.subr.mxu0 0.0
  %1750 = vmatpush1.msra.mxu0 0.0
  %1751 = vmatprep.subr.mxu0 0.0
  %1752 = vmatpush1.msra.mxu0 0.0
  %1753 = vmatprep.subr.mxu0 0.0
  %1754 = vmatpush1.msra.mxu0 0.0
  %1755 = vmatprep.subr.mxu0 0.0
  %1756 = vmatpush1.msra.mxu0 0.0
  %1757 = vmatprep.subr.mxu0 0.0
  %1758 = vmatpush1.msra.mxu0 0.0
  %1759 = vmatprep.subr.mxu0 0.0
  %1760 = vmatpush1.msra.mxu0 0.0
  %1761 = vmatprep.subr.mxu0 0.0
  %1762 = vmatpush1.msra.mxu0 0.0
  %1763 = vmatprep.subr.mxu0 0.0
  %1764 = vmatpush1.msra.mxu0 0.0
  %1765 = vmatprep.mubr.f32.mxu0 0.0
  %1766 = vmatmul.mubr.f32.gmra.mrb[0].mxu0 %v1520
  %v1767 = vpop.f32.mrb[0].mxu0
  %v1768 = vadd.f32 %v1697, %v1767
  %v1769 = vpop.f32.mrb[0].mxu0
  %v1770 = vadd.f32 %v1699, %v1769
  %1771 = vdwg.mxu0
  %v1772 = vmax.f32 %v1768, 0.0
  %v1773 = vmax.f32 %v1770, 0.0
  %v1774 = vld [vmem:[%s10] sm:$0xff]
  %v1775 = vld [vmem:[%s10 + $0x8] sm:$0xff]
  %v1776 = vld [vmem:[%s10 + $0x10] sm:$0xff]
  %v1777 = vld [vmem:[%s10 + $0x18] sm:$0xff]
  %v1778 = vld [vmem:[%s10 + $0x20] sm:$0xff]
  %v1779 = vld [vmem:[%s10 + $0x28] sm:$0xff]
  %v1780 = vld [vmem:[%s10 + $0x30] sm:$0xff]
  %v1781 = vld [vmem:[%s10 + $0x38] sm:$0xff]
  %v1782 = vld [vmem:[%s10 + $0x40] sm:$0xff]
  %v1783 = vld [vmem:[%s10 + $0x48] sm:$0xff]
  %v1784 = vld [vmem:[%s10 + $0x50] sm:$0xff]
  %v1785 = vld [vmem:[%s10 + $0x58] sm:$0xff]
  %v1786 = vld [vmem:[%s10 + $0x60] sm:$0xff]
  %v1787 = vld [vmem:[%s10 + $0x68] sm:$0xff]
  %v1788 = vld [vmem:[%s10 + $0x70] sm:$0xff]
  %v1789 = vld [vmem:[%s10 + $0x78] sm:$0xff]
  %v1790 = vld [vmem:[%s10 + $0x80] sm:$0xff]
  %v1791 = vld [vmem:[%s10 + $0x88] sm:$0xff]
  %v1792 = vld [vmem:[%s10 + $0x90] sm:$0xff]
  %v1793 = vld [vmem:[%s10 + $0x98] sm:$0xff]
  %v1794 = vld [vmem:[%s10 + $0xa0] sm:$0xff]
  %v1795 = vld [vmem:[%s10 + $0xa8] sm:$0xff]
  %v1796 = vld [vmem:[%s10 + $0xb0] sm:$0xff]
  %v1797 = vld [vmem:[%s10 + $0xb8] sm:$0xff]
  %v1798 = vld [vmem:[%s10 + $0xc0] sm:$0xff]
  %v1799 = vld [vmem:[%s10 + $0xc8] sm:$0xff]
  %v1800 = vld [vmem:[%s10 + $0xd0] sm:$0xff]
  %v1801 = vld [vmem:[%s10 + $0xd8] sm:$0xff]
  %v1802 = vld [vmem:[%s10 + $0xe0] sm:$0xff]
  %v1803 = vld [vmem:[%s10 + $0xe8] sm:$0xff]
  %v1804 = vld [vmem:[%s10 + $0xf0] sm:$0xff]
  %v1805 = vld [vmem:[%s10 + $0xf8] sm:$0xff]
  %v1806 = vld [vmem:[%s10 + $0x100] sm:$0xff]
  %v1807 = vld [vmem:[%s10 + $0x108] sm:$0xff]
  %v1808 = vld [vmem:[%s10 + $0x110] sm:$0xff]
  %v1809 = vld [vmem:[%s10 + $0x118] sm:$0xff]
  %v1810 = vld [vmem:[%s10 + $0x120] sm:$0xff]
  %v1811 = vld [vmem:[%s10 + $0x128] sm:$0xff]
  %v1812 = vld [vmem:[%s10 + $0x130] sm:$0xff]
  %v1813 = vld [vmem:[%s10 + $0x138] sm:$0xff]
  %v1814 = vld [vmem:[%s10 + $0x140] sm:$0xff]
  %v1815 = vld [vmem:[%s10 + $0x148] sm:$0xff]
  %v1816 = vld [vmem:[%s10 + $0x150] sm:$0xff]
  %v1817 = vld [vmem:[%s10 + $0x158] sm:$0xff]
  %v1818 = vld [vmem:[%s10 + $0x160] sm:$0xff]
  %v1819 = vld [vmem:[%s10 + $0x168] sm:$0xff]
  %v1820 = vld [vmem:[%s10 + $0x170] sm:$0xff]
  %v1821 = vld [vmem:[%s10 + $0x178] sm:$0xff]
  %v1822 = vld [vmem:[%s10 + $0x180] sm:$0xff]
  %v1823 = vld [vmem:[%s10 + $0x188] sm:$0xff]
  %v1824 = vld [vmem:[%s10 + $0x190] sm:$0xff]
  %v1825 = vld [vmem:[%s10 + $0x198] sm:$0xff]
  %v1826 = vld [vmem:[%s10 + $0x1a0] sm:$0xff]
  %v1827 = vld [vmem:[%s10 + $0x1a8] sm:$0xff]
  %v1828 = vld [vmem:[%s10 + $0x1b0] sm:$0xff]
  %v1829 = vld [vmem:[%s10 + $0x1b8] sm:$0xff]
  %v1830 = vld [vmem:[%s10 + $0x1c0] sm:$0xff]
  %v1831 = vld [vmem:[%s10 + $0x1c8] sm:$0xff]
  %v1832 = vld [vmem:[%s10 + $0x1d0] sm:$0xff]
  %v1833 = vld [vmem:[%s10 + $0x1d8] sm:$0xff]
  %v1834 = vld [vmem:[%s10 + $0x1e0] sm:$0xff]
  %v1835 = vld [vmem:[%s10 + $0x1e8] sm:$0xff]
  %v1836 = vld [vmem:[%s10 + $0x1f0] sm:$0xff]
  %v1837 = vld [vmem:[%s10 + $0x1f8] sm:$0xff]
  %v1838 = vld [vmem:[%s11] sm:$0x3]
  %v1840 = vlaneseq
  %v1841 = vshrl.u32 %v1840, 7
  %v1842 = vsub.s32 0, %v1841
  %v1843 = vrot.slane %v1838, %v1842
  %v1844 = vlaneseq
  %v1845 = vshrl.u32 %v1844, 7
  %v1846 = vsub.s32 1, %v1845
  %v1847 = vrot.slane %v1838, %v1846
  %1850 = vmatprep.subr.mxu0 %v1775
  %1851 = vmatpush1.msra.mxu0 %v1774
  %1852 = vmatprep.subr.mxu0 %v1777
  %1853 = vmatpush1.msra.mxu0 %v1776
  %1854 = vmatprep.subr.mxu0 %v1779
  %1855 = vmatpush1.msra.mxu0 %v1778
  %1856 = vmatprep.subr.mxu0 %v1781
  %1857 = vmatpush1.msra.mxu0 %v1780
  %1858 = vmatprep.subr.mxu0 %v1783
  %1859 = vmatpush1.msra.mxu0 %v1782
  %1860 = vmatprep.subr.mxu0 %v1785
  %1861 = vmatpush1.msra.mxu0 %v1784
  %1862 = vmatprep.subr.mxu0 %v1787
  %1863 = vmatpush1.msra.mxu0 %v1786
  %1864 = vmatprep.subr.mxu0 %v1789
  %1865 = vmatpush1.msra.mxu0 %v1788
  %1866 = vmatprep.subr.mxu0 %v1791
  %1867 = vmatpush1.msra.mxu0 %v1790
  %1868 = vmatprep.subr.mxu0 %v1793
  %1869 = vmatpush1.msra.mxu0 %v1792
  %1870 = vmatprep.subr.mxu0 %v1795
  %1871 = vmatpush1.msra.mxu0 %v1794
  %1872 = vmatprep.subr.mxu0 %v1797
  %1873 = vmatpush1.msra.mxu0 %v1796
  %1874 = vmatprep.subr.mxu0 %v1799
  %1875 = vmatpush1.msra.mxu0 %v1798
  %1876 = vmatprep.subr.mxu0 %v1801
  %1877 = vmatpush1.msra.mxu0 %v1800
  %1878 = vmatprep.subr.mxu0 %v1803
  %1879 = vmatpush1.msra.mxu0 %v1802
  %1880 = vmatprep.subr.mxu0 %v1805
  %1881 = vmatpush1.msra.mxu0 %v1804
  %1882 = vmatprep.subr.mxu0 %v1807
  %1883 = vmatpush1.msra.mxu0 %v1806
  %1884 = vmatprep.subr.mxu0 %v1809
  %1885 = vmatpush1.msra.mxu0 %v1808
  %1886 = vmatprep.subr.mxu0 %v1811
  %1887 = vmatpush1.msra.mxu0 %v1810
  %1888 = vmatprep.subr.mxu0 %v1813
  %1889 = vmatpush1.msra.mxu0 %v1812
  %1890 = vmatprep.subr.mxu0 %v1815
  %1891 = vmatpush1.msra.mxu0 %v1814
  %1892 = vmatprep.subr.mxu0 %v1817
  %1893 = vmatpush1.msra.mxu0 %v1816
  %1894 = vmatprep.subr.mxu0 %v1819
  %1895 = vmatpush1.msra.mxu0 %v1818
  %1896 = vmatprep.subr.mxu0 %v1821
  %1897 = vmatpush1.msra.mxu0 %v1820
  %1898 = vmatprep.subr.mxu0 %v1823
  %1899 = vmatpush1.msra.mxu0 %v1822
  %1900 = vmatprep.subr.mxu0 %v1825
  %1901 = vmatpush1.msra.mxu0 %v1824
  %1902 = vmatprep.subr.mxu0 %v1827
  %1903 = vmatpush1.msra.mxu0 %v1826
  %1904 = vmatprep.subr.mxu0 %v1829
  %1905 = vmatpush1.msra.mxu0 %v1828
  %1906 = vmatprep.subr.mxu0 %v1831
  %1907 = vmatpush1.msra.mxu0 %v1830
  %1908 = vmatprep.subr.mxu0 %v1833
  %1909 = vmatpush1.msra.mxu0 %v1832
  %1910 = vmatprep.subr.mxu0 %v1835
  %1911 = vmatpush1.msra.mxu0 %v1834
  %1912 = vmatprep.subr.mxu0 %v1837
  %1913 = vmatpush1.msra.mxu0 %v1836
  %1914 = vmatprep.mubr.f32.mxu0 %v1773
  %1915 = vmatmul.mubr.f32.gmra.mrb[0].mxu0 %v1772
  %v1916 = vpop.f32.mrb[0].mxu0
  %v1917 = vadd.f32 %v1843, %v1916
  %v1918 = vpop.f32.mrb[0].mxu0
  %v1919 = vadd.f32 %v1847, %v1918
  %1920 = vdwg.mxu0
  %v1921 = vmax.f32 %v1917, 0.0
  %v1922 = vmax.f32 %v1919, 0.0
  %v1923 = vld [vmem:[%s12] sm:$0xff]
  %v1924 = vld [vmem:[%s12 + $0x8] sm:$0xff]
  %v1925 = vld [vmem:[%s12 + $0x10] sm:$0xff]
  %v1926 = vld [vmem:[%s12 + $0x18] sm:$0xff]
  %v1927 = vld [vmem:[%s12 + $0x20] sm:$0xff]
  %v1928 = vld [vmem:[%s12 + $0x28] sm:$0xff]
  %v1929 = vld [vmem:[%s12 + $0x30] sm:$0xff]
  %v1930 = vld [vmem:[%s12 + $0x38] sm:$0xff]
  %v1931 = vld [vmem:[%s12 + $0x40] sm:$0xff]
  %v1932 = vld [vmem:[%s12 + $0x48] sm:$0xff]
  %v1933 = vld [vmem:[%s12 + $0x50] sm:$0xff]
  %v1934 = vld [vmem:[%s12 + $0x58] sm:$0xff]
  %v1935 = vld [vmem:[%s12 + $0x60] sm:$0xff]
  %v1936 = vld [vmem:[%s12 + $0x68] sm:$0xff]
  %v1937 = vld [vmem:[%s12 + $0x70] sm:$0xff]
  %v1938 = vld [vmem:[%s12 + $0x78] sm:$0xff]
  %v1939 = vld [vmem:[%s12 + $0x80] sm:$0xff]
  %v1940 = vld [vmem:[%s12 + $0x88] sm:$0xff]
  %v1941 = vld [vmem:[%s12 + $0x90] sm:$0xff]
  %v1942 = vld [vmem:[%s12 + $0x98] sm:$0xff]
  %v1943 = vld [vmem:[%s12 + $0xa0] sm:$0xff]
  %v1944 = vld [vmem:[%s12 + $0xa8] sm:$0xff]
  %v1945 = vld [vmem:[%s12 + $0xb0] sm:$0xff]
  %v1946 = vld [vmem:[%s12 + $0xb8] sm:$0xff]
  %v1947 = vld [vmem:[%s12 + $0xc0] sm:$0xff]
  %v1948 = vld [vmem:[%s12 + $0xc8] sm:$0xff]
  %v1949 = vld [vmem:[%s12 + $0xd0] sm:$0xff]
  %v1950 = vld [vmem:[%s12 + $0xd8] sm:$0xff]
  %v1951 = vld [vmem:[%s12 + $0xe0] sm:$0xff]
  %v1952 = vld [vmem:[%s12 + $0xe8] sm:$0xff]
  %v1953 = vld [vmem:[%s12 + $0xf0] sm:$0xff]
  %v1954 = vld [vmem:[%s12 + $0xf8] sm:$0xff]
  %v1955 = vld [vmem:[%s13] sm:$0x1]
  %v1957 = vlaneseq
  %v1958 = vshrl.u32 %v1957, 7
  %v1959 = vsub.s32 0, %v1958
  %v1960 = vrot.slane %v1955, %v1959
  %1962 = vmatprep.subr.mxu0 0.0
  %1963 = vmatpush1.msra.mxu0 %v1923
  %1964 = vmatprep.subr.mxu0 0.0
  %1965 = vmatpush1.msra.mxu0 %v1924
  %1966 = vmatprep.subr.mxu0 0.0
  %1967 = vmatpush1.msra.mxu0 %v1925
  %1968 = vmatprep.subr.mxu0 0.0
  %1969 = vmatpush1.msra.mxu0 %v1926
  %1970 = vmatprep.subr.mxu0 0.0
  %1971 = vmatpush1.msra.mxu0 %v1927
  %1972 = vmatprep.subr.mxu0 0.0
  %1973 = vmatpush1.msra.mxu0 %v1928
  %1974 = vmatprep.subr.mxu0 0.0
  %1975 = vmatpush1.msra.mxu0 %v1929
  %1976 = vmatprep.subr.mxu0 0.0
  %1977 = vmatpush1.msra.mxu0 %v1930
  %1978 = vmatprep.subr.mxu0 0.0
  %1979 = vmatpush1.msra.mxu0 %v1931
  %1980 = vmatprep.subr.mxu0 0.0
  %1981 = vmatpush1.msra.mxu0 %v1932
  %1982 = vmatprep.subr.mxu0 0.0
  %1983 = vmatpush1.msra.mxu0 %v1933
  %1984 = vmatprep.subr.mxu0 0.0
  %1985 = vmatpush1.msra.mxu0 %v1934
  %1986 = vmatprep.subr.mxu0 0.0
  %1987 = vmatpush1.msra.mxu0 %v1935
  %1988 = vmatprep.subr.mxu0 0.0
  %1989 = vmatpush1.msra.mxu0 %v1936
  %1990 = vmatprep.subr.mxu0 0.0
  %1991 = vmatpush1.msra.mxu0 %v1937
  %1992 = vmatprep.subr.mxu0 0.0
  %1993 = vmatpush1.msra.mxu0 %v1938
  %1994 = vmatprep.subr.mxu0 0.0
  %1995 = vmatpush1.msra.mxu0 %v1939
  %1996 = vmatprep.subr.mxu0 0.0
  %1997 = vmatpush1.msra.mxu0 %v1940
  %1998 = vmatprep.subr.mxu0 0.0
  %1999 = vmatpush1.msra.mxu0 %v1941
  %2000 = vmatprep.subr.mxu0 0.0
  %2001 = vmatpush1.msra.mxu0 %v1942
  %2002 = vmatprep.subr.mxu0 0.0
  %2003 = vmatpush1.msra.mxu0 %v1943
  %2004 = vmatprep.subr.mxu0 0.0
  %2005 = vmatpush1.msra.mxu0 %v1944
  %2006 = vmatprep.subr.mxu0 0.0
  %2007 = vmatpush1.msra.mxu0 %v1945
  %2008 = vmatprep.subr.mxu0 0.0
  %2009 = vmatpush1.msra.mxu0 %v1946
  %2010 = vmatprep.subr.mxu0 0.0
  %2011 = vmatpush1.msra.mxu0 %v1947
  %2012 = vmatprep.subr.mxu0 0.0
  %2013 = vmatpush1.msra.mxu0 %v1948
  %2014 = vmatprep.subr.mxu0 0.0
  %2015 = vmatpush1.msra.mxu0 %v1949
  %2016 = vmatprep.subr.mxu0 0.0
  %2017 = vmatpush1.msra.mxu0 %v1950
  %2018 = vmatprep.subr.mxu0 0.0
  %2019 = vmatpush1.msra.mxu0 %v1951
  %2020 = vmatprep.subr.mxu0 0.0
  %2021 = vmatpush1.msra.mxu0 %v1952
  %2022 = vmatprep.subr.mxu0 0.0
  %2023 = vmatpush1.msra.mxu0 %v1953
  %2024 = vmatprep.subr.mxu0 0.0
  %2025 = vmatpush1.msra.mxu0 %v1954
  %2026 = vmatprep.mubr.f32.mxu0 %v1922
  %2027 = vmatmul.mubr.f32.gmra.mrb[0].mxu0 %v1921
  %v2028 = vpop.f32.mrb[0].mxu0
  %v2029 = vadd.f32 %v1960, %v2028
  %v2030 = vpop.f32.mrb[0].mxu0
  %2031 = vdwg.mxu0
  %2032 = vst [vmem:[%s14] sm:$0xff] %v2029
  // Predicated region
  $region58: #{model_head_forward.1} parent=0 // pred_check
    _
  $region59: #{model_head_forward.1} parent=0 // pred_check_branch
    %2034 = sbr.rel (0) target = $region61
  $region60: #{model_head_forward.1} parent=0 // pred_region
    _
  $region61: #{model_head_forward.1} parent=0 // pred_fallthru
    _
  // Predicated region
  $region62: #{model_head_forward.1} parent=0 // pred_check
    _
  $region63: #{model_head_forward.1} parent=0 // pred_check_branch
    %2036 = sbr.rel (0) target = $region65
  $region64: #{model_head_forward.1} parent=0 // pred_region
    _
  $region65: #{model_head_forward.1} parent=0 // pred_fallthru
    _

</llo_original>
